<compile_context>
chip_gen: v6e
topology: v6e:2x2x1
jax: 0.10.0
libtpu: 0.0.40
codegen_flags: <defaults>
</compile_context>

<pallas_src>
import functools

import jax
import jax.numpy as jnp
from jax.experimental import pallas as pl
from jax.experimental.pallas import tpu as pltpu

COMPUTE_DTYPE = jnp.bfloat16
_VMEM_LIMIT = 48 * 1024 * 1024            # scoped VMEM limit (safe on v5e/v6e/v7x)
_IMPLICIT_VMEM_BUDGET = 20 * 1024 * 1024  # budget for the whole-image implicit conv
_TINY_N = 16                              # below this Cout, use jnp.dot (lane starved)


# ----------------------------------------------------------------------------
# Pallas kernel 1: out = maybe_relu((A @ B) + bias), bf16 MXU, f32 accumulate
# ----------------------------------------------------------------------------
def _make_mm_kernel(relu):
    def kernel(a_ref, b_ref, c_ref, o_ref, acc_ref):
        @pl.when(pl.program_id(2) == 0)
        def _():
            acc_ref[...] = jnp.zeros_like(acc_ref)

        acc_ref[...] += jnp.dot(a_ref[...], b_ref[...],
                                preferred_element_type=jnp.float32)

        @pl.when(pl.program_id(2) == pl.num_programs(2) - 1)
        def _():
            y = acc_ref[...] + c_ref[...]
            if relu:
                y = jnp.maximum(y, 0.0)
            o_ref[...] = y.astype(o_ref.dtype)

    return kernel


_MM_KERNEL = {True: _make_mm_kernel(True), False: _make_mm_kernel(False)}


def _round_up(x, m):
    return ((x + m - 1) // m) * m


def _pick_tile(d, align, candidates, full_cap, prefer_split=False):
    """Return (padded_dim, tile).  Prefers a candidate tile that divides d
    exactly (no padding); small dims get a single full-dim block.
    prefer_split=True tries to guarantee >=2 blocks (v7x dual TensorCore)."""
    if prefer_split:
        for t in candidates:
            if d >= 2 * t and d % t == 0:
                return d, t
    for t in candidates:
        if d >= t and d % t == 0:
            return d, t
    if d <= full_cap:
        p = _round_up(d, align)
        return p, p
    p = _round_up(d, candidates[-1])
    return p, candidates[-1]


def matmul_bias_act(a, b, bias, relu, out_dtype=COMPUTE_DTYPE):
    """out = maybe_relu(a @ b + bias).  a:(M,K), b:(K,N), bias:(N,)."""
    M, K = a.shape
    K2, N = b.shape
    assert K == K2
    Mp, tm = _pick_tile(M, 16, (512, 256, 128), 1024, prefer_split=True)
    Np, tn = _pick_tile(N, 1, (512, 256, 128), 512)
    Kp, tk = _pick_tile(K, 16, (1536, 1152, 768, 576, 512, 384, 256), 2048)

    a_p = a.astype(COMPUTE_DTYPE)
    b_p = b.astype(COMPUTE_DTYPE)
    if (Mp, Kp) != (M, K):
        a_p = jnp.pad(a_p, ((0, Mp - M), (0, Kp - K)))
    if (Kp, Np) != (K, N):
        b_p = jnp.pad(b_p, ((0, Kp - K), (0, Np - N)))
    bias_p = bias.astype(jnp.float32)
    if Np != N:
        bias_p = jnp.pad(bias_p, (0, Np - N))
    bias_p = bias_p.reshape(1, Np)

    out = pl.pallas_call(
        _MM_KERNEL[bool(relu)],
        out_shape=jax.ShapeDtypeStruct((Mp, Np), out_dtype),
        grid_spec=pltpu.PrefetchScalarGridSpec(
            num_scalar_prefetch=0,
            grid=(Mp // tm, Np // tn, Kp // tk),
            in_specs=[
                pl.BlockSpec((tm, tk), lambda i, j, k: (i, k)),
                pl.BlockSpec((tk, tn), lambda i, j, k: (k, j)),
                pl.BlockSpec((1, tn), lambda i, j, k: (0, j)),
            ],
            out_specs=pl.BlockSpec((tm, tn), lambda i, j, k: (i, j)),
            scratch_shapes=[pltpu.VMEM((tm, tn), jnp.float32)],
        ),
        compiler_params=pltpu.CompilerParams(
            dimension_semantics=("parallel", "parallel", "arbitrary"),
            vmem_limit_bytes=_VMEM_LIMIT),
    )(a_p, b_p, bias_p)
    if (Mp, Np) != (M, N):
        out = out[:M, :N]
    return out


# ----------------------------------------------------------------------------
# Pallas kernel 2: implicit-GEMM stride-1 conv.
# x is the padded image flattened to (L, Cin) rows; each tap (di,dj) is the
# row window starting at di*Wp+dj.  Accumulation over the Cin grid axis.
# ----------------------------------------------------------------------------
@functools.lru_cache(maxsize=None)
def _make_implicit_kernel(kh, kw, wp, m, relu):
    def kernel(x_ref, w_ref, b_ref, o_ref, acc_ref):
        @pl.when(pl.program_id(2) == 0)
        def _():
            acc_ref[...] = jnp.zeros_like(acc_ref)

        acc = acc_ref[...]
        for di in range(kh):
            for dj in range(kw):
                off = di * wp + dj
                a = x_ref[pl.ds(off, m), :]                  # (m, tc_in) bf16
                acc = acc + jnp.dot(a, w_ref[di * kw + dj],
                                    preferred_element_type=jnp.float32)
        acc_ref[...] = acc

        @pl.when(pl.program_id(2) == pl.num_programs(2) - 1)
        def _():
            y = acc_ref[...] + b_ref[...]
            if relu:
                y = jnp.maximum(y, 0.0)
            o_ref[...] = y.astype(o_ref.dtype)

    return kernel


def _chan_tiles(c):
    cands = [c]
    if c > 256 and c % 256 == 0:
        cands.append(256)
    if c > 128 and c % 128 == 0:
        cands.append(128)
    return cands


def conv2d_implicit_try(x, w_taps, bias, k, pad, relu, out_dtype):
    """Stride-1 KxK conv via implicit GEMM.  Returns None if it does not fit
    the VMEM budget (caller falls back to im2col)."""
    N, H, W, Cin = x.shape
    taps, _, Cout = w_taps.shape
    kh = kw = k
    Hp, Wp = H + 2 * pad, W + 2 * pad
    Hout, Wout = Hp - kh + 1, Wp - kw + 1
    M = Hout * Wp                       # compute all column anchors, drop the pad cols
    L = Hp * Wp + (kw - 1)              # extra rows so the last tap window is in-bounds

    def est(tci, tco):
        return (2 * L * tci * 2           # x, double buffered, bf16
                + 2 * taps * tci * tco * 2  # weights, double buffered, bf16
                + M * tco * 4               # f32 accumulator
                + 2 * M * tco * 2           # bf16 output, double buffered
                + 4 * 1024)

    chosen = None
    for tco in _chan_tiles(Cout):
        for tci in _chan_tiles(Cin):
            if est(tci, tco) <= _IMPLICIT_VMEM_BUDGET:
                chosen = (tci, tco)
                break
        if chosen:
            break
    if chosen is None:
        return None
    tc_in, tc_out = chosen

    xp = jnp.pad(x, ((0, 0), (pad, pad), (pad, pad), (0, 0)))
    xf = xp.reshape(N, Hp * Wp, Cin)
    if kw > 1:
        xf = jnp.pad(xf, ((0, 0), (0, kw - 1), (0, 0)))
    bias2 = bias.astype(jnp.float32).reshape(1, Cout)

    kernel = _make_implicit_kernel(kh, kw, Wp, M, bool(relu))
    out = pl.pallas_call(
        kernel,
        out_shape=jax.ShapeDtypeStruct((N, M, Cout), out_dtype),
        grid_spec=pltpu.PrefetchScalarGridSpec(
            num_scalar_prefetch=0,
            grid=(N, Cout // tc_out, Cin // tc_in),
            in_specs=[
                pl.BlockSpec((None, L, tc_in), lambda n, j, c: (n, 0, c)),
                pl.BlockSpec((taps, tc_in, tc_out), lambda n, j, c: (0, c, j)),
                pl.BlockSpec((1, tc_out), lambda n, j, c: (0, j)),
            ],
            out_specs=pl.BlockSpec((None, M, tc_out), lambda n, j, c: (n, 0, j)),
            scratch_shapes=[pltpu.VMEM((M, tc_out), jnp.float32)],
        ),
        compiler_params=pltpu.CompilerParams(
            dimension_semantics=("parallel", "parallel", "arbitrary"),
            vmem_limit_bytes=_VMEM_LIMIT),
    )(xf, w_taps, bias2)
    out = out.reshape(N, Hout, Wp, Cout)[:, :, :Wout, :]
    return out


# ----------------------------------------------------------------------------
# Conv wrappers
# ----------------------------------------------------------------------------
def extract_patches(x, kh, kw, stride, pad):
    """x: (N,H,W,C) -> patches (N*Ho*Wo, kh*kw*C), feature order (kh,kw,C)."""
    N, H, W, C = x.shape
    if kh == 1 and kw == 1 and pad == 0 and stride == 1:
        return x.reshape(N * H * W, C), (N, H, W)
    xp = jnp.pad(x, ((0, 0), (pad, pad), (pad, pad), (0, 0)))
    Ho = (H + 2 * pad - kh) // stride + 1
    Wo = (W + 2 * pad - kw) // stride + 1
    cols = []
    for i in range(kh):
        for j in range(kw):
            cols.append(xp[:, i:i + stride * Ho:stride, j:j + stride * Wo:stride, :])
    patches = jnp.concatenate(cols, axis=-1)
    return patches.reshape(N * Ho * Wo, kh * kw * C), (N, Ho, Wo)


def conv2d(x, w_taps, bias, k, stride, pad, relu, out_dtype=COMPUTE_DTYPE):
    """x NHWC; w_taps pre-folded layout (k*k, Cin, Cout) bf16; bias (Cout,) f32."""
    taps, Cin, Cout = w_taps.shape
    x = x.astype(COMPUTE_DTYPE)

    if Cout < _TINY_N:
        # Lane-starved output (e.g. 3-4 channels): plain jnp.dot is better than
        # a masked-vst pallas call.
        patches, (N, Ho, Wo) = extract_patches(x, k, k, stride, pad)
        y = jnp.dot(patches, w_taps.reshape(taps * Cin, Cout),
                    preferred_element_type=jnp.float32) + bias
        if relu:
            y = jnp.maximum(y, 0.0)
        return y.astype(out_dtype).reshape(N, Ho, Wo, Cout)

    if stride == 1 and taps > 1:
        y = conv2d_implicit_try(x, w_taps, bias, k, pad, relu, out_dtype)
        if y is not None:
            return y

    # Fallback (stride-2 convs, oversized maps): im2col + Pallas GEMM.
    patches, (N, Ho, Wo) = extract_patches(x, k, k, stride, pad)
    y = matmul_bias_act(patches, w_taps.reshape(taps * Cin, Cout), bias, relu,
                        out_dtype=out_dtype)
    return y.reshape(N, Ho, Wo, Cout)


def _depth_to_space2(y, N, H, W, Cout):
    """(N,H,W,2,2,Cout) -> (N,2H,2W,Cout), out[:,2h+a,2w+b] = y[:,h,w,a,b]."""
    y = jnp.transpose(y, (0, 1, 3, 2, 4, 5))
    return y.reshape(N, 2 * H, 2 * W, Cout)


def conv_transpose2d_k2s2(x, wmat, bias4, cout):
    """ConvTranspose2d(kernel=2, stride=2) as one GEMM + depth-to-space."""
    N, H, W, Cin = x.shape
    y = matmul_bias_act(x.reshape(N * H * W, Cin).astype(COMPUTE_DTYPE),
                        wmat, bias4, relu=False)
    return _depth_to_space2(y.reshape(N, H, W, 2, 2, cout), N, H, W, cout)


# ----------------------------------------------------------------------------
# Parameter folding (run ONCE, outside the forward pass)
# ----------------------------------------------------------------------------
def bn_scale_bias(bn, conv_bias=None, eps=1e-5):
    scale = bn['gamma'] / jnp.sqrt(bn['var'] + eps)
    bias = bn['beta'] - bn['mean'] * scale
    if conv_bias is not None:
        bias = bias + conv_bias * scale
    return scale, bias


def conv_w_to_taps(w, scale=None):
    """w (Cout,Cin,kh,kw) [PyTorch] -> (kh*kw, Cin, Cout) bf16, BN scale folded."""
    Cout, Cin, kh, kw = w.shape
    if scale is not None:
        w = w * scale[:, None, None, None]
    return jnp.transpose(w, (2, 3, 1, 0)).reshape(kh * kw, Cin, Cout).astype(COMPUTE_DTYPE)


def deconvT4_to_conv3_weight(w):
    """ConvTranspose2d(k=4,s=2,p=1) weight (Cin,Cout,4,4) -> equivalent 3x3 conv
    weight (4*Cout, Cin, 3, 3) producing the 4 output phases (a,b,cout) that a
    depth-to-space rearranges into the upsampled map."""
    Cin, Cout = w.shape[0], w.shape[1]
    row_map = ({0: 3, 1: 1}, {1: 2, 2: 0})      # phase a -> {patch_row: deconv ky}
    w_eq = jnp.zeros((2, 2, Cout, Cin, 3, 3), w.dtype)
    for a in (0, 1):
        for b in (0, 1):
            for pr, ky in row_map[a].items():
                for pc, kx in row_map[b].items():
                    w_eq = w_eq.at[a, b, :, :, pr, pc].set(w[:, :, ky, kx].T)
    return w_eq.reshape(4 * Cout, Cin, 3, 3)


def fold_repvgg(p, eps=1e-5):
    s3, b3 = bn_scale_bias(p['bn_dense'], eps=eps)
    w = p['w_dense'] * s3[:, None, None, None]
    b = b3
    s1, b1 = bn_scale_bias(p['bn_1x1'], eps=eps)
    w = w + jnp.pad(p['w_1x1'] * s1[:, None, None, None], ((0, 0), (0, 0), (1, 1), (1, 1)))
    b = b + b1
    if 'bn_id' in p:
        sid, bid = bn_scale_bias(p['bn_id'], eps=eps)
        c = w.shape[1]
        w = w.at[jnp.arange(c), jnp.arange(c), 1, 1].add(sid)
        b = b + bid
    return {'stride': p['stride'],
            'w': conv_w_to_taps(w), 'b': b.astype(jnp.float32),
            'se_down_w': p['se_down_w'][:, :, 0, 0].T.astype(jnp.float32),
            'se_down_b': p['se_down_b'].astype(jnp.float32),
            'se_up_w': p['se_up_w'][:, :, 0, 0].T.astype(jnp.float32),
            'se_up_b': p['se_up_b'].astype(jnp.float32)}


def fold_conv_bn(cb):
    s, b = bn_scale_bias(cb['bn'])
    k = cb['w'].shape[2]
    return {'w': conv_w_to_taps(cb['w'], s), 'b': b.astype(jnp.float32), 'k': k}


def fold_deconv(p, eps=1e-5):
    s, b = bn_scale_bias(p['bn'], eps=eps)
    cout = p['w'].shape[1]
    w3 = deconvT4_to_conv3_weight(p['w'])
    return {'w': conv_w_to_taps(w3, jnp.tile(s, 4)),
            'b': jnp.tile(b, 4).astype(jnp.float32), 'cout': cout}


def fold_deblur_up(p):
    cin, chalf = p['up_w'].shape[0], p['up_w'].shape[1]
    wmat = jnp.transpose(p['up_w'], (0, 2, 3, 1)).reshape(cin, 4 * chalf).astype(COMPUTE_DTYPE)
    return {'up_w': wmat, 'up_b': jnp.tile(p['up_b'], 4).astype(jnp.float32),
            'up_cout': chalf,
            'convs': [fold_conv_bn(cb) for cb in p['convs']]}


def fold_attention_local(ap):
    s1, b1 = bn_scale_bias(ap['bn1'], conv_bias=ap['b1'])
    s2, b2 = bn_scale_bias(ap['bn2'], conv_bias=ap['b2'])
    return {'w1': conv_w_to_taps(ap['w1'], s1), 'b1': b1.astype(jnp.float32),
            'w2': conv_w_to_taps(ap['w2'], s2), 'b2': b2.astype(jnp.float32)}


def fold_attention_global(ap):
    s1, b1 = bn_scale_bias(ap['bn1'], conv_bias=ap['b1'])
    s2, b2 = bn_scale_bias(ap['bn2'], conv_bias=ap['b2'])
    return {'w1': (ap['w1'][:, :, 0, 0] * s1[:, None]).T.astype(jnp.float32),
            'b1': b1.astype(jnp.float32),
            'w2': (ap['w2'][:, :, 0, 0] * s2[:, None]).T.astype(jnp.float32),
            'b2': b2.astype(jnp.float32)}


def fold_magff(p):
    return {'la': fold_attention_local(p['la']), 'ga': fold_attention_global(p['ga']),
            'la2': fold_attention_local(p['la2']), 'ga2': fold_attention_global(p['ga2'])}


def fold_heads(hp, head_order):
    head_convs = {h: hp[h]['w1'].shape[0] for h in head_order}
    hc = head_convs[head_order[0]]
    assert all(v == hc for v in head_convs.values()), "heads must share head_conv width"
    w1c = jnp.concatenate([hp[h]['w1'] for h in head_order], axis=0)
    b1c = jnp.concatenate([hp[h]['b1'] for h in head_order], axis=0)
    nouts = [hp[h]['w2'].shape[0] for h in head_order]
    total_out, total_in = sum(nouts), len(head_order) * hc
    w2c = jnp.zeros((total_in, total_out), jnp.float32)
    b2c = jnp.concatenate([hp[h]['b2'] for h in head_order], axis=0)
    off = 0
    for i, h in enumerate(head_order):
        w2 = hp[h]['w2'][:, :, 0, 0]                 # (nout, hc)
        w2c = w2c.at[i * hc:(i + 1) * hc, off:off + w2.shape[0]].set(w2.T)
        off += w2.shape[0]
    return {'w1': conv_w_to_taps(w1c), 'b1': b1c.astype(jnp.float32),
            'w2': w2c.astype(COMPUTE_DTYPE), 'b2': b2c.astype(jnp.float32),
            'order': tuple(head_order), 'nouts': tuple(nouts)}


def fold_params(p):
    f = {'stage0': fold_repvgg(p['stage0'])}
    for s in ('stage1', 'stage2', 'stage3', 'stage4'):
        f[s] = [fold_repvgg(bp) for bp in p[s]]
    f['lfamm'] = jnp.transpose(p['lfamm'], (1, 2, 0))        # (H, Wf, C) for NHWC
    f['magff'] = fold_magff(p['magff'])
    for d in ('deconv1', 'deconv2', 'deconv3'):
        f[d] = fold_deconv(p[d])
    for d in ('dd1', 'dd2', 'dd3', 'dd4'):
        f[d] = [fold_conv_bn(cb) for cb in p[d]]
    for d in ('du1', 'du2', 'du3', 'du4', 'du5'):
        f[d] = fold_deblur_up(p[d])
    f['heads'] = fold_heads(p['heads'], sorted(p['heads']))
    return f


# ----------------------------------------------------------------------------
# Module forwards (operate on folded params, bf16 activations)
# ----------------------------------------------------------------------------
def repvgg_block(x, fp):
    y = conv2d(x, fp['w'], fp['b'], k=3, stride=fp['stride'], pad=1, relu=False)
    # SEBlock: global average pool (feature maps are square) + two tiny FCs.
    pooled = jnp.mean(y, axis=(1, 2), dtype=jnp.float32)                   # (N, C)
    d = jax.nn.relu(pooled @ fp['se_down_w'] + fp['se_down_b'])
    gate = jax.nn.sigmoid(d @ fp['se_up_w'] + fp['se_up_b'])               # (N, C) f32
    return jnp.maximum(y * gate.astype(y.dtype)[:, None, None, :], 0.0)


def conv_bn_relu(x, cb, stride=1, pad=1):
    return conv2d(x, cb['w'], cb['b'], k=cb['k'], stride=stride, pad=pad, relu=True)


def deblur_down(x, fps):
    x = conv_bn_relu(x, fps[0], stride=2)
    x = conv_bn_relu(x, fps[1], stride=1)
    x = conv_bn_relu(x, fps[2], stride=1)
    return x


def deblur_up(x1, x2, fp):
    x1u = conv_transpose2d_k2s2(x1, fp['up_w'], fp['up_b'], fp['up_cout'])
    if x2 is None:
        x = x1u
    else:
        dY = x2.shape[1] - x1u.shape[1]
        dX = x2.shape[2] - x1u.shape[2]
        x1u = jnp.pad(x1u, ((0, 0), (dY // 2, dY - dY // 2),
                            (dX // 2, dX - dX // 2), (0, 0)))
        x = jnp.concatenate([x2.astype(COMPUTE_DTYPE), x1u], axis=-1)
    for cb in fp['convs']:
        x = conv_bn_relu(x, cb, stride=1, pad=1)
    return x


def deconv_layer(x, fp):
    """ConvTranspose2d(k=4,s=2,p=1)+BN+ReLU folded into one 3x3 conv (4*Cout
    channels) + depth-to-space."""
    N, H, W, _ = x.shape
    cout = fp['cout']
    y = conv2d(x, fp['w'], fp['b'], k=3, stride=1, pad=1, relu=True)       # (N,H,W,4*cout)
    return _depth_to_space2(y.reshape(N, H, W, 2, 2, cout), N, H, W, cout)


def attention_branch(x, ap):
    h = conv2d(x, ap['w1'], ap['b1'], k=1, stride=1, pad=0, relu=True)
    return conv2d(h, ap['w2'], ap['b2'], k=1, stride=1, pad=0, relu=False)


def attention_global(x, ap):
    g = jnp.mean(x, axis=(1, 2), dtype=jnp.float32)                        # (N, C)
    h = jax.nn.relu(g @ ap['w1'] + ap['b1'])
    return h @ ap['w2'] + ap['b2']                                          # (N, C) f32


def magff(x1, x2, p):
    xa = x1 + x2
    w = jax.nn.sigmoid(attention_branch(xa, p['la']).astype(jnp.float32)
                       + attention_global(xa, p['ga'])[:, None, None, :])
    w = w.astype(x1.dtype)
    xi = x1 * w + x2 * (1.0 - w)
    w2 = jax.nn.sigmoid(attention_branch(xi, p['la2']).astype(jnp.float32)
                        + attention_global(xi, p['ga2'])[:, None, None, :])
    w2 = w2.astype(x1.dtype)
    return x1 * w2 + x2 * (1.0 - w2)


def lfamm(x, conv_param):
    # Reference: x_fft = rfftn(x)+1e-8; amp=|x_fft|; pha=angle(x_fft);
    #            out = irfftn((amp*conv)*exp(i*pha)) == irfftn(conv*(rfftn(x)+1e-8)).
    # NHWC throughout (no full-tensor transposes); conv_param is (H, Wf, C).
    # TODO(synk): rfft/irfft have no Pallas equivalent on TPU; they stay in jnp.fft.
    xf32 = x.astype(jnp.float32)
    B, H, W, C = xf32.shape
    xf = jnp.fft.rfftn(xf32, axes=(1, 2)) + 1e-8
    xf = xf * conv_param[None]
    return jnp.fft.irfftn(xf, s=(H, W), axes=(1, 2)).astype(jnp.float32)


def run_heads(out, hp):
    """Fused detection heads: one 3x3 conv (concat Cout) then one block-diagonal
    1x1 (total N=4 -> jnp.dot, lane-starved on MXU), split per head."""
    h1 = conv2d(out, hp['w1'], hp['b1'], k=3, stride=1, pad=1, relu=True)
    N, H, W, Ci = h1.shape
    h2 = jnp.dot(h1.reshape(N * H * W, Ci), hp['w2'],
                 preferred_element_type=jnp.float32) + hp['b2']
    h2 = h2.reshape(N, H, W, -1)
    ret, off = {}, 0
    for h, n in zip(hp['order'], hp['nouts']):
        ret[h] = jnp.transpose(h2[..., off:off + n], (0, 3, 1, 2)).astype(jnp.float32)
        off += n
    return ret


# ----------------------------------------------------------------------------
# Parameter init (deterministic, synthetic; inference-mode BN stats)
# ----------------------------------------------------------------------------
class KeyGen:
    def __init__(self, seed=0):
        self._key = jax.random.PRNGKey(seed)

    def __call__(self):
        self._key, sub = jax.random.split(self._key)
        return sub


def init_conv_w(kg, cout, cin, kh, kw):
    fan_in = cin * kh * kw
    return jax.random.normal(kg(), (cout, cin, kh, kw), jnp.float32) * (2.0 / fan_in) ** 0.5


def init_convT_w(kg, cin, cout, kh, kw):
    fan_in = cin * kh * kw
    return jax.random.normal(kg(), (cin, cout, kh, kw), jnp.float32) * (2.0 / fan_in) ** 0.5


def init_bias(kg, c):
    return jax.random.normal(kg(), (c,), jnp.float32) * 0.02


def init_bn(kg, c):
    return {'gamma': jax.random.uniform(kg(), (c,), jnp.float32, 0.5, 1.5),
            'beta': jax.random.normal(kg(), (c,), jnp.float32) * 0.1,
            'mean': jax.random.normal(kg(), (c,), jnp.float32) * 0.1,
            'var': jax.random.uniform(kg(), (c,), jnp.float32, 0.5, 1.5)}


def init_repvgg(kg, cin, cout, stride):
    p = {'stride': stride,
         'w_dense': init_conv_w(kg, cout, cin, 3, 3), 'bn_dense': init_bn(kg, cout),
         'w_1x1': init_conv_w(kg, cout, cin, 1, 1), 'bn_1x1': init_bn(kg, cout)}
    if cin == cout and stride == 1:
        p['bn_id'] = init_bn(kg, cin)
    internal = cout // 16
    p['se_down_w'] = init_conv_w(kg, internal, cout, 1, 1)
    p['se_down_b'] = init_bias(kg, internal)
    p['se_up_w'] = init_conv_w(kg, cout, internal, 1, 1)
    p['se_up_b'] = init_bias(kg, cout)
    return p


def init_stage(kg, cin, planes, num_blocks, stride):
    strides = [stride] + [1] * (num_blocks - 1)
    blocks, c = [], cin
    for s in strides:
        blocks.append(init_repvgg(kg, c, planes, s))
        c = planes
    return blocks, c


def init_conv_bn(kg, cin, cout, k):
    return {'w': init_conv_w(kg, cout, cin, k, k), 'bn': init_bn(kg, cout)}


def init_deblur_down(kg, cin, cout):
    return [init_conv_bn(kg, cin, cout, 3),
            init_conv_bn(kg, cout, cout, 3),
            init_conv_bn(kg, cout, cout, 3)]


def init_deblur_up(kg, cin, mid, cout):
    return {'up_w': init_convT_w(kg, cin, cin // 2, 2, 2),
            'up_b': init_bias(kg, cin // 2),
            'convs': [init_conv_bn(kg, mid, cout, 3),
                      init_conv_bn(kg, cout, cout, 3),
                      init_conv_bn(kg, cout, cout, 3)]}


def init_deconv(kg, cin, cout=256):
    return {'w': init_convT_w(kg, cin, cout, 4, 4), 'bn': init_bn(kg, cout)}


def init_attention(kg, c, internal):
    return {'w1': init_conv_w(kg, internal, c, 1, 1), 'b1': init_bias(kg, internal),
            'bn1': init_bn(kg, internal),
            'w2': init_conv_w(kg, c, internal, 1, 1), 'b2': init_bias(kg, c),
            'bn2': init_bn(kg, c)}


def init_magff(kg, c=128, r=4):
    internal = c // r
    return {'la': init_attention(kg, c, internal), 'ga': init_attention(kg, c, internal),
            'la2': init_attention(kg, c, internal), 'ga2': init_attention(kg, c, internal)}


def init_params(seed, heads, head_conv, input_hw):
    kg = KeyGen(seed)
    H, W = input_hw
    p = {}
    p['stage0'] = init_repvgg(kg, 3, 64, 2)
    c = 64
    p['stage1'], c = init_stage(kg, c, 64, 4, 2)
    p['stage2'], c = init_stage(kg, c, 128, 6, 2)
    # NOTE: reference hard-codes LFAMM(128,128,128) which requires 1024x1024
    # inputs; scaled here to the actual stage2 feature-map size.
    h8, w8 = H // 8, W // 8
    p['lfamm'] = jax.random.uniform(kg(), (128, h8, w8 // 2 + 1), jnp.float32)
    p['magff'] = init_magff(kg, 128, 4)
    p['stage3'], c = init_stage(kg, c, 256, 16, 2)
    p['stage4'], c = init_stage(kg, c, 512, 1, 2)
    p['deconv1'] = init_deconv(kg, 512, 256)
    p['deconv2'] = init_deconv(kg, 256, 256)
    p['deconv3'] = init_deconv(kg, 256, 256)
    p['dd1'] = init_deblur_down(kg, 64, 64)
    p['dd2'] = init_deblur_down(kg, 64, 128)
    p['dd3'] = init_deblur_down(kg, 128, 256)
    p['dd4'] = init_deblur_down(kg, 256, 512)
    p['du1'] = init_deblur_up(kg, 512, 512, 256)
    p['du2'] = init_deblur_up(kg, 256, 256, 128)
    p['du3'] = init_deblur_up(kg, 128, 128, 64)
    p['du4'] = init_deblur_up(kg, 64, 96, 64)
    p['du5'] = init_deblur_up(kg, 64, 32, 3)
    p['heads'] = {}
    for head in sorted(heads):
        nout = heads[head]
        p['heads'][head] = {
            'w1': init_conv_w(kg, head_conv, 256, 3, 3), 'b1': init_bias(kg, head_conv),
            'w2': init_conv_w(kg, nout, head_conv, 1, 1), 'b2': init_bias(kg, nout)}
    return p


# ----------------------------------------------------------------------------
# DREB_Net forward (expects folded params)
# ----------------------------------------------------------------------------
def dreb_forward(x_nchw, params, mode='train'):
    x = jnp.transpose(x_nchw, (0, 2, 3, 1)).astype(COMPUTE_DTYPE)   # NCHW -> NHWC

    out = repvgg_block(x, params['stage0'])
    s0 = out
    s1 = deblur_down(s0, params['dd1'])
    s2 = deblur_down(s1, params['dd2'])

    for bp in params['stage1']:
        out = repvgg_block(out, bp)
    for bp in params['stage2']:
        out = repvgg_block(out, bp)

    out_lfamm = lfamm(out, params['lfamm'])
    out = magff(out, s2, params['magff'])
    out = (out_lfamm + out.astype(jnp.float32)).astype(COMPUTE_DTYPE)

    for bp in params['stage3']:
        out = repvgg_block(out, bp)
    for bp in params['stage4']:
        out = repvgg_block(out, bp)

    out = deconv_layer(out, params['deconv1'])
    out = deconv_layer(out, params['deconv2'])
    out = deconv_layer(out, params['deconv3'])

    ret = run_heads(out, params['heads'])

    if mode == 'val':
        return [ret]
    elif mode == 'train':
        down3 = deblur_down(s2, params['dd3'])
        down4 = deblur_down(down3, params['dd4'])
        up1 = deblur_up(down4, down3, params['du1'])
        up2 = deblur_up(up1, s2, params['du2'])
        up3 = deblur_up(up2, s1, params['du3'])
        up4 = deblur_up(up3, s0, params['du4'])
        deblur_out = deblur_up(up4, None, params['du5'])
        return [ret], jnp.transpose(deblur_out, (0, 3, 1, 2)).astype(jnp.float32)  # NCHW
    else:
        raise ValueError('mode not eq train/val!!!')


# ----------------------------------------------------------------------------
if __name__ == "__main__":
    key = jax.random.PRNGKey(0)
    x = jax.random.normal(key, (2, 3, 64, 64), jnp.float32)       # NCHW like PyTorch
    heads = {'hm': 2, 'wh': 2}
    raw_params = init_params(seed=0, heads=heads, head_conv=32, input_hw=(64, 64))
    params = fold_params(raw_params)   # RepVGG/BN/deconv/head folding done once
    params = jax.block_until_ready(params)

    ret_list, deblur_out = dreb_forward(x, params, mode='train')
    jax.block_until_ready((ret_list, deblur_out))

    # basic shape sanity
    assert deblur_out.shape == (2, 3, 64, 64)
    assert ret_list[0]['hm'].shape == (2, 2, 16, 16)
    assert ret_list[0]['wh'].shape == (2, 2, 16, 16)
    print("KERNEL_OK")
</pallas_src>

<mosaic_0001>
module attributes {stable_mosaic.version = 11 : i64} {
  func.func @kernel(%arg0: i32, %arg1: i32, %arg2: i32, %arg3: memref<512x32xbf16, #tpu.memory_space<vmem>>, %arg4: memref<32x64xbf16, #tpu.memory_space<vmem>>, %arg5: memref<1x64xf32, #tpu.memory_space<vmem>>, %arg6: memref<512x64xbf16, #tpu.memory_space<vmem>>, %arg7: memref<512x64xf32, #tpu.memory_space<vmem>>) attributes {dimension_semantics = [#tpu.dimension_semantics<parallel>, #tpu.dimension_semantics<parallel>, #tpu.dimension_semantics<arbitrary>], iteration_bounds = array<i64: 4, 1, 1>, scalar_prefetch = 0 : i64, scratch_operands = 1 : i64, tpu.core_type = #tpu.core_type<tc>, window_params = [{transform_indices = @transform_0, window_bounds = array<i64: 512, 32>}, {transform_indices = @transform_1, window_bounds = array<i64: 32, 64>}, {transform_indices = @transform_2, window_bounds = array<i64: 1, 64>}, {transform_indices = @transform_3, window_bounds = array<i64: 512, 64>}]} {
    %c0_i32 = arith.constant 0 : i32
    %0 = arith.cmpi eq, %arg2, %c0_i32 : i32
    %1 = arith.extui %0 : i1 to i32
    %c0_i32_0 = arith.constant 0 : i32
    %2 = arith.cmpi ne, %1, %c0_i32_0 : i32
    scf.if %2 {
      %cst_10 = arith.constant 0.000000e+00 : f32
      %12 = vector.broadcast %cst_10 : f32 to vector<512x64xf32>
      %c0_11 = arith.constant 0 : index
      %c0_12 = arith.constant 0 : index
      %13 = vector.load %arg7[%c0_11, %c0_12] : memref<512x64xf32, #tpu.memory_space<vmem>>, vector<512x64xf32>
      tpu.vector_store %arg7[%c0_11, %c0_12], %12 {strides = array<i32>} : memref<512x64xf32, #tpu.memory_space<vmem>>, vector<512x64xf32>,
    } else {
    }
    %c0 = arith.constant 0 : index
    %c0_1 = arith.constant 0 : index
    %3 = vector.load %arg7[%c0, %c0_1] : memref<512x64xf32, #tpu.memory_space<vmem>>, vector<512x64xf32>
    %c0_2 = arith.constant 0 : index
    %c0_3 = arith.constant 0 : index
    %4 = vector.load %arg3[%c0_2, %c0_3] : memref<512x32xbf16, #tpu.memory_space<vmem>>, vector<512x32xbf16>
    %c0_4 = arith.constant 0 : index
    %c0_5 = arith.constant 0 : index
    %5 = vector.load %arg4[%c0_4, %c0_5] : memref<32x64xbf16, #tpu.memory_space<vmem>>, vector<32x64xbf16>
    %cst = arith.constant dense<0.000000e+00> : vector<512x64xf32>
    %6 = tpu.matmul %4, %5, %cst {dimension_numbers = #tpu.dot_dimension_numbers<[1], [0], [0], [1], [0, 0, 1, 1], [], []>} : vector<512x32xbf16>, vector<32x64xbf16>, vector<512x64xf32> -> vector<512x64xf32>
    %7 = arith.addf %3, %6 : vector<512x64xf32>
    %c0_6 = arith.constant 0 : index
    %c0_7 = arith.constant 0 : index
    %8 = vector.load %arg7[%c0_6, %c0_7] : memref<512x64xf32, #tpu.memory_space<vmem>>, vector<512x64xf32>
    tpu.vector_store %arg7[%c0_6, %c0_7], %7 {strides = array<i32>} : memref<512x64xf32, #tpu.memory_space<vmem>>, vector<512x64xf32>,
    %c0_i32_8 = arith.constant 0 : i32
    %9 = arith.cmpi eq, %arg2, %c0_i32_8 : i32
    %10 = arith.extui %9 : i1 to i32
    %c0_i32_9 = arith.constant 0 : i32
    %11 = arith.cmpi ne, %10, %c0_i32_9 : i32
    scf.if %11 {
      %c0_10 = arith.constant 0 : index
      %c0_11 = arith.constant 0 : index
      %12 = vector.load %arg7[%c0_10, %c0_11] : memref<512x64xf32, #tpu.memory_space<vmem>>, vector<512x64xf32>
      %c0_12 = arith.constant 0 : index
      %c0_13 = arith.constant 0 : index
      %13 = vector.load %arg5[%c0_12, %c0_13] : memref<1x64xf32, #tpu.memory_space<vmem>>, vector<1x64xf32>
      %14 = vector.broadcast %13 : vector<1x64xf32> to vector<512x64xf32>
      %15 = arith.addf %12, %14 : vector<512x64xf32>
      %16 = arith.truncf %15 : vector<512x64xf32> to vector<512x64xbf16>
      %c0_14 = arith.constant 0 : index
      %c0_15 = arith.constant 0 : index
      %17 = vector.load %arg6[%c0_14, %c0_15] : memref<512x64xbf16, #tpu.memory_space<vmem>>, vector<512x64xbf16>
      tpu.vector_store %arg6[%c0_14, %c0_15], %16 {strides = array<i32>} : memref<512x64xbf16, #tpu.memory_space<vmem>>, vector<512x64xbf16>,
    } else {
    }
    return
  }
  func.func @transform_0(%arg0: i32, %arg1: i32, %arg2: i32) -> (i32, i32) {
    %c0_i32 = arith.constant 0 : i32
    return %arg0, %arg2 : i32, i32
  }
  func.func @transform_1(%arg0: i32, %arg1: i32, %arg2: i32) -> (i32, i32) {
    %c0_i32 = arith.constant 0 : i32
    return %arg2, %arg1 : i32, i32
  }
  func.func @transform_2(%arg0: i32, %arg1: i32, %arg2: i32) -> (i32, i32) {
    %c0_i32 = arith.constant 0 : i32
    %c0_i32_0 = arith.constant 0 : i32
    return %c0_i32, %arg1 : i32, i32
  }
  func.func @transform_3(%arg0: i32, %arg1: i32, %arg2: i32) -> (i32, i32) {
    %c0_i32 = arith.constant 0 : i32
    return %arg0, %arg1 : i32, i32
  }
}

</mosaic_0001>

<llo_original>
// kernel: tpu_custom_call.1
$region0: #{tpu_custom_call.1}
  #allocation0 [shape = 'u32[]', space=smem, size = 0x4, offset = 0x4, fixed_abs, tag = 'smem constant byte address 0x4 - core index']
  #allocation1 [shape = 'u32[144,128]{1,0:T(1,128)}', space=vmem, size = 0x12000, scoped, tag = 'internal scratch']
  #allocation2 [shape = 'f32[512,64]{1,0:T(8,128)}', space=vmem, size = 0x40000, scoped, tag = 'scratch operand']
  %s0 = inlined_call_operand.vmem [shape: bf16[2048,32], index: 0, kind: input, shape index: {}]
  %s1 = inlined_call_operand.vmem [shape: bf16[32,64], index: 1, kind: input, shape index: {}]
  %s2 = inlined_call_operand.vmem [shape: f32[1,64], index: 2, kind: input, shape index: {}]
  %s3 = inlined_call_operand.vmem [shape: bf16[2048,64], index: 3, kind: output, shape index: {}]
  %s4 = sld [smem:[#allocation0]]
  $region53: #{tpu_custom_call.1} parent=0
    _
  %s6 = ssub.s32 1, %s4
  %s7 = scalar_select 0, %s6, %s4
  loop: start=0, step=1, limit=6
  $region2: #{tpu_custom_call.1} parent=0 // loop_pre_header
    _
  $region3: #{tpu_custom_call.1} parent=0 // loop_header
    %s9 = sphi 0, %s13
    %p10 = scmp.ge.s32.totalorder %s9, 6
    %s16 = sphi 0, %s35
    %s17 = sphi 0, %s31
    %s18 = sphi 0, %s27
    %s19 = sphi 0, %s16
    %s20 = sphi 0, %s17
    %s21 = sphi 0, %s18
    %s22 = sphi 0, %s19
    %s23 = sphi 0, %s20
    %s24 = sphi 0, %s21
    %s40 = sphi 0, %s42
    %s43 = sphi 0, %s40
    %s44 = sphi 0, %s43
    %s60 = sphi 0, %s44
    %s68 = sphi 0, %s70
    %s71 = sphi 0, %s68
    %s72 = sphi 0, %s71
    %s88 = sphi 0, %s72
    %s94 = sphi 0, %s96
    %s97 = sphi 0, %s94
    %s98 = sphi 0, %s97
    %s114 = sphi 0, %s98
    %s122 = sphi 0, %s124
    %s125 = sphi 0, %s122
    %s126 = sphi 0, %s125
    %s142 = sphi 0, %s126
  $region4: #{tpu_custom_call.1} parent=0 // loop_header_branch
    %12 = sbr.rel (%p10) target = $region8
  $region5: #{tpu_custom_call.1} parent=0 // loop_body
    %s14 = ssub.s32 %s9, 1
    %s15 = ssub.s32 %s9, 2
    %s25 = sadd.s32 1, %s18
    %p26 = scmp.ge.s32.totalorder %s25, 1
    %s27 = scalar_select %p26, 0, %s25
    %s28 = sadd.s32 1, %s17
    %s29 = scalar_select %p26, %s28, %s17
    %p30 = scmp.ge.s32.totalorder %s29, 1
    %s31 = scalar_select %p30, 0, %s29
    %s32 = sadd.s32 1, %s16
    %s33 = scalar_select %p30, %s32, %s16
    %p34 = scmp.ge.s32.totalorder %s33, 4
    %s35 = scalar_select %p34, 0, %s33
    %s36 = ssub.s32 %s16, %s35
    %s37 = ssub.s32 %s18, %s27
    %s38 = sor.u32 %s36, %s37
    %p39 = scmp.eq.s32.totalorder %s38, 0
    %s41 = sadd.s32 %s40, 1
    %s42 = scalar_select %p39, %s40, %s41
    %p45 = pneg %p39
    %p46 = scmp.eq.s32.totalorder %s9, 3
    %p47 = por %p45, %p46
    %p48 = scmp.ne.s32.totalorder %s40, %s43
    %p49 = scmp.eq.s32.totalorder %s9, 0
    %p50 = por %p48, %p49
    %p51 = scmp.ne.s32.totalorder %s40, %s43
    %p52 = scmp.eq.s32.totalorder %s14, 3
    %p53 = por %p51, %p52
    %p54 = scmp.ne.s32.totalorder %s43, %s44
    %p55 = scmp.eq.s32.totalorder %s14, 0
    %p56 = por %p54, %p55
    %p57 = scmp.ne.s32.totalorder %s43, %s44
    %p58 = scmp.eq.s32.totalorder %s15, 3
    %p59 = por %p57, %p58
    %p61 = scmp.ne.s32.totalorder %s44, %s60
    %p62 = scmp.eq.s32.totalorder %s15, 0
    %p63 = por %p61, %p62
    %s64 = ssub.s32 %s18, %s27
    %s65 = ssub.s32 %s17, %s31
    %s66 = sor.u32 %s64, %s65
    %p67 = scmp.eq.s32.totalorder %s66, 0
    %s69 = sadd.s32 %s68, 1
    %s70 = scalar_select %p67, %s68, %s69
    %p73 = pneg %p67
    %p74 = scmp.eq.s32.totalorder %s9, 3
    %p75 = por %p73, %p74
    %p76 = scmp.ne.s32.totalorder %s68, %s71
    %p77 = scmp.eq.s32.totalorder %s9, 0
    %p78 = por %p76, %p77
    %p79 = scmp.ne.s32.totalorder %s68, %s71
    %p80 = scmp.eq.s32.totalorder %s14, 3
    %p81 = por %p79, %p80
    %p82 = scmp.ne.s32.totalorder %s71, %s72
    %p83 = scmp.eq.s32.totalorder %s14, 0
    %p84 = por %p82, %p83
    %p85 = scmp.ne.s32.totalorder %s71, %s72
    %p86 = scmp.eq.s32.totalorder %s15, 3
    %p87 = por %p85, %p86
    %p89 = scmp.ne.s32.totalorder %s72, %s88
    %p90 = scmp.eq.s32.totalorder %s15, 0
    %p91 = por %p89, %p90
    %s92 = ssub.s32 %s17, %s31
    %p93 = scmp.eq.s32.totalorder %s92, 0
    %s95 = sadd.s32 %s94, 1
    %s96 = scalar_select %p93, %s94, %s95
    %p99 = pneg %p93
    %p100 = scmp.eq.s32.totalorder %s9, 3
    %p101 = por %p99, %p100
    %p102 = scmp.ne.s32.totalorder %s94, %s97
    %p103 = scmp.eq.s32.totalorder %s9, 0
    %p104 = por %p102, %p103
    %p105 = scmp.ne.s32.totalorder %s94, %s97
    %p106 = scmp.eq.s32.totalorder %s14, 3
    %p107 = por %p105, %p106
    %p108 = scmp.ne.s32.totalorder %s97, %s98
    %p109 = scmp.eq.s32.totalorder %s14, 0
    %p110 = por %p108, %p109
    %p111 = scmp.ne.s32.totalorder %s97, %s98
    %p112 = scmp.eq.s32.totalorder %s15, 3
    %p113 = por %p111, %p112
    %p115 = scmp.ne.s32.totalorder %s98, %s114
    %p116 = scmp.eq.s32.totalorder %s15, 0
    %p117 = por %p115, %p116
    %s118 = ssub.s32 %s16, %s35
    %s119 = ssub.s32 %s17, %s31
    %s120 = sor.u32 %s118, %s119
    %p121 = scmp.eq.s32.totalorder %s120, 0
    %s123 = sadd.s32 %s122, 1
    %s124 = scalar_select %p121, %s122, %s123
    %p127 = pneg %p121
    %p128 = scmp.eq.s32.totalorder %s9, 3
    %p129 = por %p127, %p128
    %p130 = scmp.ne.s32.totalorder %s122, %s125
    %p131 = scmp.eq.s32.totalorder %s9, 0
    %p132 = por %p130, %p131
    %p133 = scmp.ne.s32.totalorder %s122, %s125
    %p134 = scmp.eq.s32.totalorder %s14, 3
    %p135 = por %p133, %p134
    %p136 = scmp.ne.s32.totalorder %s125, %s126
    %p137 = scmp.eq.s32.totalorder %s14, 0
    %p138 = por %p136, %p137
    %p139 = scmp.ne.s32.totalorder %s125, %s126
    %p140 = scmp.eq.s32.totalorder %s15, 3
    %p141 = por %p139, %p140
    %p143 = scmp.ne.s32.totalorder %s126, %s142
    %p144 = scmp.eq.s32.totalorder %s15, 0
    %p145 = por %p143, %p144
    %p146 = scmp.le.s32.totalorder 1, %s9
    %p147 = scmp.lt.s32.totalorder %s9, 5
    %p148 = pnand %p146, %p147
    %p149 = pneg %p148
    // Predicated region
    $region9: #{tpu_custom_call.1} parent=5 // pred_check
      _
    $region10: #{tpu_custom_call.1} parent=5 // pred_check_branch
      %151 = sbr.rel (%p148) target = $region12
    $region11: #{tpu_custom_call.1} parent=5 // pred_region
      %s152 = ssub.s32 %s9, 1
      // Predicated region
      $region13: #{tpu_custom_call.1} parent=11 // pred_check
        %p153 = pneg %p84
      $region14: #{tpu_custom_call.1} parent=11 // pred_check_branch
        %155 = sbr.rel (%p153) target = $region16
      $region15: #{tpu_custom_call.1} parent=11 // pred_region
        %s156 = smul.u32 4, %s21
        %p157 = scmp.lt.s32.totalorder %s156, 3
        %s158 = scalar_select %p157, %s156, 3
        %p159 = scmp.lt.s32.totalorder %s20, 0
        %s160 = scalar_select %p159, %s20, 0
        %s161 = sadd.s32 %s160, %s158
        %s162 = smul.addr %s161, 4
        %s163 = scalar_lea.vmem %s1, %s162
        %s164 = smul.u32 4, %s21
      $region16: #{tpu_custom_call.1} parent=11 // pred_fallthru
        _
      // Predicated region
      $region17: #{tpu_custom_call.1} parent=11 // pred_check
        %p165 = pneg %p110
      $region18: #{tpu_custom_call.1} parent=11 // pred_check_branch
        %167 = sbr.rel (%p165) target = $region20
      $region19: #{tpu_custom_call.1} parent=11 // pred_region
        %p168 = scmp.lt.s32.totalorder %s20, 0
        %s169 = scalar_select %p168, %s20, 0
        %s170 = scalar_lea.vmem %s2, %s169
      $region20: #{tpu_custom_call.1} parent=11 // pred_fallthru
        _
    $region12: #{tpu_custom_call.1} parent=5 // pred_fallthru
      _
    %p171 = scmp.lt.s32.totalorder %s9, 4
    // Predicated region
    $region21: #{tpu_custom_call.1} parent=5 // pred_check
      %p172 = pneg %p171
    $region22: #{tpu_custom_call.1} parent=5 // pred_check_branch
      %174 = sbr.rel (%p172) target = $region24
    $region23: #{tpu_custom_call.1} parent=5 // pred_region
      // Predicated region
      $region25: #{tpu_custom_call.1} parent=23 // pred_check
        %p175 = pneg %p50
      $region26: #{tpu_custom_call.1} parent=23 // pred_check_branch
        %177 = sbr.rel (%p175) target = $region28
      $region27: #{tpu_custom_call.1} parent=23 // pred_region
        %s178 = smul.u32 64, %s16
        %p179 = scmp.lt.s32.totalorder %s178, 255
        %s180 = scalar_select %p179, %s178, 255
        %p181 = scmp.lt.s32.totalorder %s18, 0
        %s182 = scalar_select %p181, %s18, 0
        %s183 = sadd.s32 %s182, %s180
        %s184 = smul.addr %s183, 4
        %s185 = scalar_lea.vmem %s0, %s184
        %s186 = smul.u32 64, %s16
      $region28: #{tpu_custom_call.1} parent=23 // pred_fallthru
        _
    $region24: #{tpu_custom_call.1} parent=5 // pred_fallthru
      _
    %p187 = scmp.le.s32.totalorder 1, %s9
    %p188 = scmp.lt.s32.totalorder %s9, 5
    %p189 = pnand %p187, %p188
    %p190 = pneg %p189
    // Predicated region
    $region29: #{tpu_custom_call.1} parent=5 // pred_check
      _
    $region30: #{tpu_custom_call.1} parent=5 // pred_check_branch
      %192 = sbr.rel (%p189) target = $region32
    $region31: #{tpu_custom_call.1} parent=5 // pred_region
      %s193 = ssub.s32 %s9, 1
      %s194 = smul.u32 64, %s19
      %p195 = scmp.lt.s32.totalorder %s194, 255
      %s196 = scalar_select %p195, %s194, 255
      %p197 = scmp.lt.s32.totalorder %s21, 0
      %s198 = scalar_select %p197, %s21, 0
      %s199 = sadd.s32 %s198, %s196
      %s200 = smul.addr %s199, 4
      %s201 = scalar_lea.vmem %s0, %s200
      %p202 = pneg %p56
      %p203 = pneg %p53
      %s204 = smul.u32 4, %s21
      %p205 = scmp.lt.s32.totalorder %s204, 3
      %s206 = scalar_select %p205, %s204, 3
      %p207 = scmp.lt.s32.totalorder %s20, 0
      %s208 = scalar_select %p207, %s20, 0
      %s209 = sadd.s32 %s208, %s206
      %s210 = smul.addr %s209, 4
      %s211 = scalar_lea.vmem %s1, %s210
      %p212 = pneg %p84
      %p213 = pneg %p81
      %p214 = scmp.lt.s32.totalorder %s20, 0
      %s215 = scalar_select %p214, %s20, 0
      %s216 = scalar_lea.vmem %s2, %s215
      %p217 = pneg %p110
      %p218 = pneg %p107
      %p219 = pneg %p138
      %p220 = pneg %p135
      %s221 = smul.u32 64, %s19
      %p222 = scmp.lt.s32.totalorder %s221, 255
      %s223 = scalar_select %p222, %s221, 255
      %p224 = scmp.lt.s32.totalorder %s20, 0
      %s225 = scalar_select %p224, %s20, 0
      %s226 = sadd.s32 %s225, %s223
      %s227 = smul.addr %s226, 4
      %s228 = scalar_lea.vmem %s3, %s227
      %s229 = smul.u32 64, %s19
      %p230 = scmp.lt.s32.totalorder %s229, 255
      %s231 = scalar_select %p230, %s229, 255
      %p232 = scmp.lt.s32.totalorder %s21, 0
      %s233 = scalar_select %p232, %s21, 0
      %s234 = sadd.s32 %s233, %s231
      %s235 = smul.addr %s234, 4
      %s236 = scalar_lea.vmem %s0, %s235
      %s237 = smul.u32 64, %s19
      %s238 = smul.u32 4, %s21
      %p239 = scmp.lt.s32.totalorder %s238, 3
      %s240 = scalar_select %p239, %s238, 3
      %p241 = scmp.lt.s32.totalorder %s20, 0
      %s242 = scalar_select %p241, %s20, 0
      %s243 = sadd.s32 %s242, %s240
      %s244 = smul.addr %s243, 4
      %s245 = scalar_lea.vmem %s1, %s244
      %s246 = smul.u32 4, %s21
      %p247 = scmp.lt.s32.totalorder %s20, 0
      %s248 = scalar_select %p247, %s20, 0
      %s249 = scalar_lea.vmem %s2, %s248
      %s250 = smul.u32 64, %s19
      %p251 = scmp.lt.s32.totalorder %s250, 255
      %s252 = scalar_select %p251, %s250, 255
      %p253 = scmp.lt.s32.totalorder %s20, 0
      %s254 = scalar_select %p253, %s20, 0
      %s255 = sadd.s32 %s254, %s252
      %s256 = smul.addr %s255, 4
      %s257 = scalar_lea.vmem %s3, %s256
      %s258 = smul.u32 64, %s19
      %p260 = scmp.eq.s32.totalorder %s21, 0
      // Predicated region
      $region33: #{tpu_custom_call.1} parent=31 // pred_check
        %p261 = pneg %p260
      $region34: #{tpu_custom_call.1} parent=31 // pred_check_branch
        %263 = sbr.rel (%p261) target = $region36
      $region35: #{tpu_custom_call.1} parent=31 // pred_region
        %vm264 = vcmask 523264
        %265 = vst.msk [vmem:[#allocation2] sm:$0xff] %vm264, 0.0
        %266 = vst.msk [vmem:[#allocation2 + $0x8] sm:$0xff] %vm264, 0.0
        %267 = vst.msk [vmem:[#allocation2 + $0x10] sm:$0xff] %vm264, 0.0
        %268 = vst.msk [vmem:[#allocation2 + $0x18] sm:$0xff] %vm264, 0.0
        %269 = vst.msk [vmem:[#allocation2 + $0x20] sm:$0xff] %vm264, 0.0
        %270 = vst.msk [vmem:[#allocation2 + $0x28] sm:$0xff] %vm264, 0.0
        %271 = vst.msk [vmem:[#allocation2 + $0x30] sm:$0xff] %vm264, 0.0
        %272 = vst.msk [vmem:[#allocation2 + $0x38] sm:$0xff] %vm264, 0.0
        %273 = vst.msk [vmem:[#allocation2 + $0x40] sm:$0xff] %vm264, 0.0
        %274 = vst.msk [vmem:[#allocation2 + $0x48] sm:$0xff] %vm264, 0.0
        %275 = vst.msk [vmem:[#allocation2 + $0x50] sm:$0xff] %vm264, 0.0
        %276 = vst.msk [vmem:[#allocation2 + $0x58] sm:$0xff] %vm264, 0.0
        %277 = vst.msk [vmem:[#allocation2 + $0x60] sm:$0xff] %vm264, 0.0
        %278 = vst.msk [vmem:[#allocation2 + $0x68] sm:$0xff] %vm264, 0.0
        %279 = vst.msk [vmem:[#allocation2 + $0x70] sm:$0xff] %vm264, 0.0
        %280 = vst.msk [vmem:[#allocation2 + $0x78] sm:$0xff] %vm264, 0.0
        %281 = vst.msk [vmem:[#allocation2 + $0x80] sm:$0xff] %vm264, 0.0
        %282 = vst.msk [vmem:[#allocation2 + $0x88] sm:$0xff] %vm264, 0.0
        %283 = vst.msk [vmem:[#allocation2 + $0x90] sm:$0xff] %vm264, 0.0
        %284 = vst.msk [vmem:[#allocation2 + $0x98] sm:$0xff] %vm264, 0.0
        %285 = vst.msk [vmem:[#allocation2 + $0xa0] sm:$0xff] %vm264, 0.0
        %286 = vst.msk [vmem:[#allocation2 + $0xa8] sm:$0xff] %vm264, 0.0
        %287 = vst.msk [vmem:[#allocation2 + $0xb0] sm:$0xff] %vm264, 0.0
        %288 = vst.msk [vmem:[#allocation2 + $0xb8] sm:$0xff] %vm264, 0.0
        %289 = vst.msk [vmem:[#allocation2 + $0xc0] sm:$0xff] %vm264, 0.0
        %290 = vst.msk [vmem:[#allocation2 + $0xc8] sm:$0xff] %vm264, 0.0
        %291 = vst.msk [vmem:[#allocation2 + $0xd0] sm:$0xff] %vm264, 0.0
        %292 = vst.msk [vmem:[#allocation2 + $0xd8] sm:$0xff] %vm264, 0.0
        %293 = vst.msk [vmem:[#allocation2 + $0xe0] sm:$0xff] %vm264, 0.0
        %294 = vst.msk [vmem:[#allocation2 + $0xe8] sm:$0xff] %vm264, 0.0
        %295 = vst.msk [vmem:[#allocation2 + $0xf0] sm:$0xff] %vm264, 0.0
        %296 = vst.msk [vmem:[#allocation2 + $0xf8] sm:$0xff] %vm264, 0.0
        %297 = vst.msk [vmem:[#allocation2 + $0x100] sm:$0xff] %vm264, 0.0
        %298 = vst.msk [vmem:[#allocation2 + $0x108] sm:$0xff] %vm264, 0.0
        %299 = vst.msk [vmem:[#allocation2 + $0x110] sm:$0xff] %vm264, 0.0
        %300 = vst.msk [vmem:[#allocation2 + $0x118] sm:$0xff] %vm264, 0.0
        %301 = vst.msk [vmem:[#allocation2 + $0x120] sm:$0xff] %vm264, 0.0
        %302 = vst.msk [vmem:[#allocation2 + $0x128] sm:$0xff] %vm264, 0.0
        %303 = vst.msk [vmem:[#allocation2 + $0x130] sm:$0xff] %vm264, 0.0
        %304 = vst.msk [vmem:[#allocation2 + $0x138] sm:$0xff] %vm264, 0.0
        %305 = vst.msk [vmem:[#allocation2 + $0x140] sm:$0xff] %vm264, 0.0
        %306 = vst.msk [vmem:[#allocation2 + $0x148] sm:$0xff] %vm264, 0.0
        %307 = vst.msk [vmem:[#allocation2 + $0x150] sm:$0xff] %vm264, 0.0
        %308 = vst.msk [vmem:[#allocation2 + $0x158] sm:$0xff] %vm264, 0.0
        %309 = vst.msk [vmem:[#allocation2 + $0x160] sm:$0xff] %vm264, 0.0
        %310 = vst.msk [vmem:[#allocation2 + $0x168] sm:$0xff] %vm264, 0.0
        %311 = vst.msk [vmem:[#allocation2 + $0x170] sm:$0xff] %vm264, 0.0
        %312 = vst.msk [vmem:[#allocation2 + $0x178] sm:$0xff] %vm264, 0.0
        %313 = vst.msk [vmem:[#allocation2 + $0x180] sm:$0xff] %vm264, 0.0
        %314 = vst.msk [vmem:[#allocation2 + $0x188] sm:$0xff] %vm264, 0.0
        %315 = vst.msk [vmem:[#allocation2 + $0x190] sm:$0xff] %vm264, 0.0
        %316 = vst.msk [vmem:[#allocation2 + $0x198] sm:$0xff] %vm264, 0.0
        %317 = vst.msk [vmem:[#allocation2 + $0x1a0] sm:$0xff] %vm264, 0.0
        %318 = vst.msk [vmem:[#allocation2 + $0x1a8] sm:$0xff] %vm264, 0.0
        %319 = vst.msk [vmem:[#allocation2 + $0x1b0] sm:$0xff] %vm264, 0.0
        %320 = vst.msk [vmem:[#allocation2 + $0x1b8] sm:$0xff] %vm264, 0.0
        %321 = vst.msk [vmem:[#allocation2 + $0x1c0] sm:$0xff] %vm264, 0.0
        %322 = vst.msk [vmem:[#allocation2 + $0x1c8] sm:$0xff] %vm264, 0.0
        %323 = vst.msk [vmem:[#allocation2 + $0x1d0] sm:$0xff] %vm264, 0.0
        %324 = vst.msk [vmem:[#allocation2 + $0x1d8] sm:$0xff] %vm264, 0.0
        %325 = vst.msk [vmem:[#allocation2 + $0x1e0] sm:$0xff] %vm264, 0.0
        %326 = vst.msk [vmem:[#allocation2 + $0x1e8] sm:$0xff] %vm264, 0.0
        %327 = vst.msk [vmem:[#allocation2 + $0x1f0] sm:$0xff] %vm264, 0.0
        %328 = vst.msk [vmem:[#allocation2 + $0x1f8] sm:$0xff] %vm264, 0.0
      $region36: #{tpu_custom_call.1} parent=31 // pred_fallthru
        _
      %v329 = vld [vmem:[#allocation2] sm:$0xff]
      %v330 = vld [vmem:[#allocation2 + $0x8] sm:$0xff]
      %v331 = vld [vmem:[#allocation2 + $0x10] sm:$0xff]
      %v332 = vld [vmem:[#allocation2 + $0x18] sm:$0xff]
      %v333 = vld [vmem:[#allocation2 + $0x20] sm:$0xff]
      %v334 = vld [vmem:[#allocation2 + $0x28] sm:$0xff]
      %v335 = vld [vmem:[#allocation2 + $0x30] sm:$0xff]
      %v336 = vld [vmem:[#allocation2 + $0x38] sm:$0xff]
      %v337 = vld [vmem:[#allocation2 + $0x40] sm:$0xff]
      %v338 = vld [vmem:[#allocation2 + $0x48] sm:$0xff]
      %v339 = vld [vmem:[#allocation2 + $0x50] sm:$0xff]
      %v340 = vld [vmem:[#allocation2 + $0x58] sm:$0xff]
      %v341 = vld [vmem:[#allocation2 + $0x60] sm:$0xff]
      %v342 = vld [vmem:[#allocation2 + $0x68] sm:$0xff]
      %v343 = vld [vmem:[#allocation2 + $0x70] sm:$0xff]
      %v344 = vld [vmem:[#allocation2 + $0x78] sm:$0xff]
      %v345 = vld [vmem:[#allocation2 + $0x80] sm:$0xff]
      %v346 = vld [vmem:[#allocation2 + $0x88] sm:$0xff]
      %v347 = vld [vmem:[#allocation2 + $0x90] sm:$0xff]
      %v348 = vld [vmem:[#allocation2 + $0x98] sm:$0xff]
      %v349 = vld [vmem:[#allocation2 + $0xa0] sm:$0xff]
      %v350 = vld [vmem:[#allocation2 + $0xa8] sm:$0xff]
      %v351 = vld [vmem:[#allocation2 + $0xb0] sm:$0xff]
      %v352 = vld [vmem:[#allocation2 + $0xb8] sm:$0xff]
      %v353 = vld [vmem:[#allocation2 + $0xc0] sm:$0xff]
      %v354 = vld [vmem:[#allocation2 + $0xc8] sm:$0xff]
      %v355 = vld [vmem:[#allocation2 + $0xd0] sm:$0xff]
      %v356 = vld [vmem:[#allocation2 + $0xd8] sm:$0xff]
      %v357 = vld [vmem:[#allocation2 + $0xe0] sm:$0xff]
      %v358 = vld [vmem:[#allocation2 + $0xe8] sm:$0xff]
      %v359 = vld [vmem:[#allocation2 + $0xf0] sm:$0xff]
      %v360 = vld [vmem:[#allocation2 + $0xf8] sm:$0xff]
      %v361 = vld [vmem:[#allocation2 + $0x100] sm:$0xff]
      %v362 = vld [vmem:[#allocation2 + $0x108] sm:$0xff]
      %v363 = vld [vmem:[#allocation2 + $0x110] sm:$0xff]
      %v364 = vld [vmem:[#allocation2 + $0x118] sm:$0xff]
      %v365 = vld [vmem:[#allocation2 + $0x120] sm:$0xff]
      %v366 = vld [vmem:[#allocation2 + $0x128] sm:$0xff]
      %v367 = vld [vmem:[#allocation2 + $0x130] sm:$0xff]
      %v368 = vld [vmem:[#allocation2 + $0x138] sm:$0xff]
      %v369 = vld [vmem:[#allocation2 + $0x140] sm:$0xff]
      %v370 = vld [vmem:[#allocation2 + $0x148] sm:$0xff]
      %v371 = vld [vmem:[#allocation2 + $0x150] sm:$0xff]
      %v372 = vld [vmem:[#allocation2 + $0x158] sm:$0xff]
      %v373 = vld [vmem:[#allocation2 + $0x160] sm:$0xff]
      %v374 = vld [vmem:[#allocation2 + $0x168] sm:$0xff]
      %v375 = vld [vmem:[#allocation2 + $0x170] sm:$0xff]
      %v376 = vld [vmem:[#allocation2 + $0x178] sm:$0xff]
      %v377 = vld [vmem:[#allocation2 + $0x180] sm:$0xff]
      %v378 = vld [vmem:[#allocation2 + $0x188] sm:$0xff]
      %v379 = vld [vmem:[#allocation2 + $0x190] sm:$0xff]
      %v380 = vld [vmem:[#allocation2 + $0x198] sm:$0xff]
      %v381 = vld [vmem:[#allocation2 + $0x1a0] sm:$0xff]
      %v382 = vld [vmem:[#allocation2 + $0x1a8] sm:$0xff]
      %v383 = vld [vmem:[#allocation2 + $0x1b0] sm:$0xff]
      %v384 = vld [vmem:[#allocation2 + $0x1b8] sm:$0xff]
      %v385 = vld [vmem:[#allocation2 + $0x1c0] sm:$0xff]
      %v386 = vld [vmem:[#allocation2 + $0x1c8] sm:$0xff]
      %v387 = vld [vmem:[#allocation2 + $0x1d0] sm:$0xff]
      %v388 = vld [vmem:[#allocation2 + $0x1d8] sm:$0xff]
      %v389 = vld [vmem:[#allocation2 + $0x1e0] sm:$0xff]
      %v390 = vld [vmem:[#allocation2 + $0x1e8] sm:$0xff]
      %v391 = vld [vmem:[#allocation2 + $0x1f0] sm:$0xff]
      %v392 = vld [vmem:[#allocation2 + $0x1f8] sm:$0xff]
      %v393 = vld [vmem:[%s236] sm:$0xf]
      %v394 = vld [vmem:[%s236 + $0x4] sm:$0xf]
      %v395 = vld [vmem:[%s236 + $0x8] sm:$0xf]
      %v396 = vld [vmem:[%s236 + $0xc] sm:$0xf]
      %v397 = vld [vmem:[%s236 + $0x10] sm:$0xf]
      %v398 = vld [vmem:[%s236 + $0x14] sm:$0xf]
      %v399 = vld [vmem:[%s236 + $0x18] sm:$0xf]
      %v400 = vld [vmem:[%s236 + $0x1c] sm:$0xf]
      %v401 = vld [vmem:[%s236 + $0x20] sm:$0xf]
      %v402 = vld [vmem:[%s236 + $0x24] sm:$0xf]
      %v403 = vld [vmem:[%s236 + $0x28] sm:$0xf]
      %v404 = vld [vmem:[%s236 + $0x2c] sm:$0xf]
      %v405 = vld [vmem:[%s236 + $0x30] sm:$0xf]
      %v406 = vld [vmem:[%s236 + $0x34] sm:$0xf]
      %v407 = vld [vmem:[%s236 + $0x38] sm:$0xf]
      %v408 = vld [vmem:[%s236 + $0x3c] sm:$0xf]
      %v409 = vld [vmem:[%s236 + $0x40] sm:$0xf]
      %v410 = vld [vmem:[%s236 + $0x44] sm:$0xf]
      %v411 = vld [vmem:[%s236 + $0x48] sm:$0xf]
      %v412 = vld [vmem:[%s236 + $0x4c] sm:$0xf]
      %v413 = vld [vmem:[%s236 + $0x50] sm:$0xf]
      %v414 = vld [vmem:[%s236 + $0x54] sm:$0xf]
      %v415 = vld [vmem:[%s236 + $0x58] sm:$0xf]
      %v416 = vld [vmem:[%s236 + $0x5c] sm:$0xf]
      %v417 = vld [vmem:[%s236 + $0x60] sm:$0xf]
      %v418 = vld [vmem:[%s236 + $0x64] sm:$0xf]
      %v419 = vld [vmem:[%s236 + $0x68] sm:$0xf]
      %v420 = vld [vmem:[%s236 + $0x6c] sm:$0xf]
      %v421 = vld [vmem:[%s236 + $0x70] sm:$0xf]
      %v422 = vld [vmem:[%s236 + $0x74] sm:$0xf]
      %v423 = vld [vmem:[%s236 + $0x78] sm:$0xf]
      %v424 = vld [vmem:[%s236 + $0x7c] sm:$0xf]
      %v425 = vld [vmem:[%s236 + $0x80] sm:$0xf]
      %v426 = vld [vmem:[%s236 + $0x84] sm:$0xf]
      %v427 = vld [vmem:[%s236 + $0x88] sm:$0xf]
      %v428 = vld [vmem:[%s236 + $0x8c] sm:$0xf]
      %v429 = vld [vmem:[%s236 + $0x90] sm:$0xf]
      %v430 = vld [vmem:[%s236 + $0x94] sm:$0xf]
      %v431 = vld [vmem:[%s236 + $0x98] sm:$0xf]
      %v432 = vld [vmem:[%s236 + $0x9c] sm:$0xf]
      %v433 = vld [vmem:[%s236 + $0xa0] sm:$0xf]
      %v434 = vld [vmem:[%s236 + $0xa4] sm:$0xf]
      %v435 = vld [vmem:[%s236 + $0xa8] sm:$0xf]
      %v436 = vld [vmem:[%s236 + $0xac] sm:$0xf]
      %v437 = vld [vmem:[%s236 + $0xb0] sm:$0xf]
      %v438 = vld [vmem:[%s236 + $0xb4] sm:$0xf]
      %v439 = vld [vmem:[%s236 + $0xb8] sm:$0xf]
      %v440 = vld [vmem:[%s236 + $0xbc] sm:$0xf]
      %v441 = vld [vmem:[%s236 + $0xc0] sm:$0xf]
      %v442 = vld [vmem:[%s236 + $0xc4] sm:$0xf]
      %v443 = vld [vmem:[%s236 + $0xc8] sm:$0xf]
      %v444 = vld [vmem:[%s236 + $0xcc] sm:$0xf]
      %v445 = vld [vmem:[%s236 + $0xd0] sm:$0xf]
      %v446 = vld [vmem:[%s236 + $0xd4] sm:$0xf]
      %v447 = vld [vmem:[%s236 + $0xd8] sm:$0xf]
      %v448 = vld [vmem:[%s236 + $0xdc] sm:$0xf]
      %v449 = vld [vmem:[%s236 + $0xe0] sm:$0xf]
      %v450 = vld [vmem:[%s236 + $0xe4] sm:$0xf]
      %v451 = vld [vmem:[%s236 + $0xe8] sm:$0xf]
      %v452 = vld [vmem:[%s236 + $0xec] sm:$0xf]
      %v453 = vld [vmem:[%s236 + $0xf0] sm:$0xf]
      %v454 = vld [vmem:[%s236 + $0xf4] sm:$0xf]
      %v455 = vld [vmem:[%s236 + $0xf8] sm:$0xf]
      %v456 = vld [vmem:[%s236 + $0xfc] sm:$0xf]
      %v457 = vld [vmem:[%s245] sm:$0xf]
      %v458 = vld [vmem:[%s245 + $0x4] sm:$0xf]
      %v459 = vld [vmem:[%s245 + $0x8] sm:$0xf]
      %v460 = vld [vmem:[%s245 + $0xc] sm:$0xf]
      %v525 = vunpack.c.l.b16 %v393
      %v526 = vunpack.c.l.b16 %v394
      %v527 = vunpack.c.l.b16 %v395
      %v528 = vunpack.c.l.b16 %v396
      %v529 = vunpack.c.l.b16 %v397
      %v530 = vunpack.c.l.b16 %v398
      %v531 = vunpack.c.l.b16 %v399
      %v532 = vunpack.c.l.b16 %v400
      %v533 = vunpack.c.l.b16 %v401
      %v534 = vunpack.c.l.b16 %v402
      %v535 = vunpack.c.l.b16 %v403
      %v536 = vunpack.c.l.b16 %v404
      %v537 = vunpack.c.l.b16 %v405
      %v538 = vunpack.c.l.b16 %v406
      %v539 = vunpack.c.l.b16 %v407
      %v540 = vunpack.c.l.b16 %v408
      %v541 = vunpack.c.l.b16 %v409
      %v542 = vunpack.c.l.b16 %v410
      %v543 = vunpack.c.l.b16 %v411
      %v544 = vunpack.c.l.b16 %v412
      %v545 = vunpack.c.l.b16 %v413
      %v546 = vunpack.c.l.b16 %v414
      %v547 = vunpack.c.l.b16 %v415
      %v548 = vunpack.c.l.b16 %v416
      %v549 = vunpack.c.l.b16 %v417
      %v550 = vunpack.c.l.b16 %v418
      %v551 = vunpack.c.l.b16 %v419
      %v552 = vunpack.c.l.b16 %v420
      %v553 = vunpack.c.l.b16 %v421
      %v554 = vunpack.c.l.b16 %v422
      %v555 = vunpack.c.l.b16 %v423
      %v556 = vunpack.c.l.b16 %v424
      %v557 = vunpack.c.l.b16 %v425
      %v558 = vunpack.c.l.b16 %v426
      %v559 = vunpack.c.l.b16 %v427
      %v560 = vunpack.c.l.b16 %v428
      %v561 = vunpack.c.l.b16 %v429
      %v562 = vunpack.c.l.b16 %v430
      %v563 = vunpack.c.l.b16 %v431
      %v564 = vunpack.c.l.b16 %v432
      %v565 = vunpack.c.l.b16 %v433
      %v566 = vunpack.c.l.b16 %v434
      %v567 = vunpack.c.l.b16 %v435
      %v568 = vunpack.c.l.b16 %v436
      %v569 = vunpack.c.l.b16 %v437
      %v570 = vunpack.c.l.b16 %v438
      %v571 = vunpack.c.l.b16 %v439
      %v572 = vunpack.c.l.b16 %v440
      %v573 = vunpack.c.l.b16 %v441
      %v574 = vunpack.c.l.b16 %v442
      %v575 = vunpack.c.l.b16 %v443
      %v576 = vunpack.c.l.b16 %v444
      %v577 = vunpack.c.l.b16 %v445
      %v578 = vunpack.c.l.b16 %v446
      %v579 = vunpack.c.l.b16 %v447
      %v580 = vunpack.c.l.b16 %v448
      %v581 = vunpack.c.l.b16 %v449
      %v582 = vunpack.c.l.b16 %v450
      %v583 = vunpack.c.l.b16 %v451
      %v584 = vunpack.c.l.b16 %v452
      %v585 = vunpack.c.l.b16 %v453
      %v586 = vunpack.c.l.b16 %v454
      %v587 = vunpack.c.l.b16 %v455
      %v588 = vunpack.c.l.b16 %v456
      %v589 = vpack.c.b16 %v526, %v525
      %v590 = vpack.c.b16 %v528, %v527
      %v591 = vpack.c.b16 %v530, %v529
      %v592 = vpack.c.b16 %v532, %v531
      %v593 = vpack.c.b16 %v534, %v533
      %v594 = vpack.c.b16 %v536, %v535
      %v595 = vpack.c.b16 %v538, %v537
      %v596 = vpack.c.b16 %v540, %v539
      %v597 = vpack.c.b16 %v542, %v541
      %v598 = vpack.c.b16 %v544, %v543
      %v599 = vpack.c.b16 %v546, %v545
      %v600 = vpack.c.b16 %v548, %v547
      %v601 = vpack.c.b16 %v550, %v549
      %v602 = vpack.c.b16 %v552, %v551
      %v603 = vpack.c.b16 %v554, %v553
      %v604 = vpack.c.b16 %v556, %v555
      %v605 = vpack.c.b16 %v558, %v557
      %v606 = vpack.c.b16 %v560, %v559
      %v607 = vpack.c.b16 %v562, %v561
      %v608 = vpack.c.b16 %v564, %v563
      %v609 = vpack.c.b16 %v566, %v565
      %v610 = vpack.c.b16 %v568, %v567
      %v611 = vpack.c.b16 %v570, %v569
      %v612 = vpack.c.b16 %v572, %v571
      %v613 = vpack.c.b16 %v574, %v573
      %v614 = vpack.c.b16 %v576, %v575
      %v615 = vpack.c.b16 %v578, %v577
      %v616 = vpack.c.b16 %v580, %v579
      %v617 = vpack.c.b16 %v582, %v581
      %v618 = vpack.c.b16 %v584, %v583
      %v619 = vpack.c.b16 %v586, %v585
      %v620 = vpack.c.b16 %v588, %v587
      %v625 = vunpack.c.l.b16 %v457
      %v626 = vunpack.c.l.b16 %v458
      %v627 = vunpack.c.l.b16 %v459
      %v628 = vunpack.c.l.b16 %v460
      %v629 = vpack.c.b16 %v626, %v625
      %v630 = vpack.c.b16 %v628, %v627
      %vm633 = vcmask 261120
      %v635 = vsel %vm633, %v589, 0
      %v638 = vsel %vm633, %v590, 0
      %v641 = vsel %vm633, %v591, 0
      %v644 = vsel %vm633, %v592, 0
      %v647 = vsel %vm633, %v593, 0
      %v650 = vsel %vm633, %v594, 0
      %v653 = vsel %vm633, %v595, 0
      %v656 = vsel %vm633, %v596, 0
      %v659 = vsel %vm633, %v597, 0
      %v662 = vsel %vm633, %v598, 0
      %v665 = vsel %vm633, %v599, 0
      %v668 = vsel %vm633, %v600, 0
      %v671 = vsel %vm633, %v601, 0
      %v674 = vsel %vm633, %v602, 0
      %v677 = vsel %vm633, %v603, 0
      %v680 = vsel %vm633, %v604, 0
      %v683 = vsel %vm633, %v605, 0
      %v686 = vsel %vm633, %v606, 0
      %v689 = vsel %vm633, %v607, 0
      %v692 = vsel %vm633, %v608, 0
      %v695 = vsel %vm633, %v609, 0
      %v698 = vsel %vm633, %v610, 0
      %v701 = vsel %vm633, %v611, 0
      %v704 = vsel %vm633, %v612, 0
      %v707 = vsel %vm633, %v613, 0
      %v710 = vsel %vm633, %v614, 0
      %v713 = vsel %vm633, %v615, 0
      %v716 = vsel %vm633, %v616, 0
      %v719 = vsel %vm633, %v617, 0
      %v722 = vsel %vm633, %v618, 0
      %v725 = vsel %vm633, %v619, 0
      %v728 = vsel %vm633, %v620, 0
      %730 = vmatprep.subr.bf16.mxu0 0
      %731 = vmatpush1.bf16.msra.mxu0 0
      %732 = vmatprep.subr.bf16.mxu0 0
      %733 = vmatpush1.bf16.msra.mxu0 0
      %734 = vmatprep.subr.bf16.mxu0 0
      %735 = vmatpush1.bf16.msra.mxu0 0
      %736 = vmatprep.subr.bf16.mxu0 0
      %737 = vmatpush1.bf16.msra.mxu0 0
      %738 = vmatprep.subr.bf16.mxu0 0
      %739 = vmatpush1.bf16.msra.mxu0 0
      %740 = vmatprep.subr.bf16.mxu0 0
      %741 = vmatpush1.bf16.msra.mxu0 0
      %742 = vmatprep.subr.bf16.mxu0 0
      %743 = vmatpush1.bf16.msra.mxu0 %v630
      %744 = vmatprep.subr.bf16.mxu0 0
      %745 = vmatpush1.bf16.msra.mxu0 %v629
      %746 = vmatprep.subr.bf16.mxu0 0
      %747 = vmatpush2.bf16.msra.mxu0 0
      %748 = vmatprep.subr.bf16.mxu0 0
      %749 = vmatpush2.bf16.msra.mxu0 0
      %750 = vmatprep.subr.bf16.mxu0 0
      %751 = vmatpush2.bf16.msra.mxu0 0
      %752 = vmatprep.subr.bf16.mxu0 0
      %753 = vmatpush2.bf16.msra.mxu0 0
      %754 = vmatprep.subr.bf16.mxu0 0
      %755 = vmatpush2.bf16.msra.mxu0 0
      %756 = vmatprep.subr.bf16.mxu0 0
      %757 = vmatpush2.bf16.msra.mxu0 0
      %758 = vmatprep.subr.bf16.mxu0 0
      %759 = vmatpush2.bf16.msra.mxu0 0
      %760 = vmatprep.subr.bf16.mxu0 0
      %761 = vmatpush2.bf16.msra.mxu0 0
      %762 = vmatprep.mubr.bf16.mxu0 0
      %763 = vmatmul.mubr.bf16.gmra.mxu0 %v635
      %v764 = vpop.f32.mrf.mxu0
      %v765 = vadd.f32 0.0, %v764
      %v766 = vpop.f32.mrf.mxu0
      %v767 = vpop.f32.mrf.mxu0
      %v768 = vadd.f32 0.0, %v767
      %v769 = vpop.f32.mrf.mxu0
      %770 = vmatprep.mubr.bf16.mxu0 0
      %771 = vmatmul.mubr.bf16.gmra.mxu0 %v638
      %v772 = vpop.f32.mrf.mxu0
      %v773 = vadd.f32 0.0, %v772
      %v774 = vpop.f32.mrf.mxu0
      %v775 = vpop.f32.mrf.mxu0
      %v776 = vadd.f32 0.0, %v775
      %v777 = vpop.f32.mrf.mxu0
      %778 = vmatprep.mubr.bf16.mxu0 0
      %779 = vmatmul.mubr.bf16.gmra.mxu0 %v641
      %v780 = vpop.f32.mrf.mxu0
      %v781 = vadd.f32 0.0, %v780
      %v782 = vpop.f32.mrf.mxu0
      %v783 = vpop.f32.mrf.mxu0
      %v784 = vadd.f32 0.0, %v783
      %v785 = vpop.f32.mrf.mxu0
      %786 = vmatprep.mubr.bf16.mxu0 0
      %787 = vmatmul.mubr.bf16.gmra.mxu0 %v644
      %v788 = vpop.f32.mrf.mxu0
      %v789 = vadd.f32 0.0, %v788
      %v790 = vpop.f32.mrf.mxu0
      %v791 = vpop.f32.mrf.mxu0
      %v792 = vadd.f32 0.0, %v791
      %v793 = vpop.f32.mrf.mxu0
      %794 = vmatprep.mubr.bf16.mxu0 0
      %795 = vmatmul.mubr.bf16.gmra.mxu0 %v647
      %v796 = vpop.f32.mrf.mxu0
      %v797 = vadd.f32 0.0, %v796
      %v798 = vpop.f32.mrf.mxu0
      %v799 = vpop.f32.mrf.mxu0
      %v800 = vadd.f32 0.0, %v799
      %v801 = vpop.f32.mrf.mxu0
      %802 = vmatprep.mubr.bf16.mxu0 0
      %803 = vmatmul.mubr.bf16.gmra.mxu0 %v650
      %v804 = vpop.f32.mrf.mxu0
      %v805 = vadd.f32 0.0, %v804
      %v806 = vpop.f32.mrf.mxu0
      %v807 = vpop.f32.mrf.mxu0
      %v808 = vadd.f32 0.0, %v807
      %v809 = vpop.f32.mrf.mxu0
      %810 = vmatprep.mubr.bf16.mxu0 0
      %811 = vmatmul.mubr.bf16.gmra.mxu0 %v653
      %v812 = vpop.f32.mrf.mxu0
      %v813 = vadd.f32 0.0, %v812
      %v814 = vpop.f32.mrf.mxu0
      %v815 = vpop.f32.mrf.mxu0
      %v816 = vadd.f32 0.0, %v815
      %v817 = vpop.f32.mrf.mxu0
      %818 = vmatprep.mubr.bf16.mxu0 0
      %819 = vmatmul.mubr.bf16.gmra.mxu0 %v656
      %v820 = vpop.f32.mrf.mxu0
      %v821 = vadd.f32 0.0, %v820
      %v822 = vpop.f32.mrf.mxu0
      %v823 = vpop.f32.mrf.mxu0
      %v824 = vadd.f32 0.0, %v823
      %v825 = vpop.f32.mrf.mxu0
      %826 = vmatprep.mubr.bf16.mxu0 0
      %827 = vmatmul.mubr.bf16.gmra.mxu0 %v659
      %v828 = vpop.f32.mrf.mxu0
      %v829 = vadd.f32 0.0, %v828
      %v830 = vpop.f32.mrf.mxu0
      %v831 = vpop.f32.mrf.mxu0
      %v832 = vadd.f32 0.0, %v831
      %v833 = vpop.f32.mrf.mxu0
      %834 = vmatprep.mubr.bf16.mxu0 0
      %835 = vmatmul.mubr.bf16.gmra.mxu0 %v662
      %v836 = vpop.f32.mrf.mxu0
      %v837 = vadd.f32 0.0, %v836
      %v838 = vpop.f32.mrf.mxu0
      %v839 = vpop.f32.mrf.mxu0
      %v840 = vadd.f32 0.0, %v839
      %v841 = vpop.f32.mrf.mxu0
      %842 = vmatprep.mubr.bf16.mxu0 0
      %843 = vmatmul.mubr.bf16.gmra.mxu0 %v665
      %v844 = vpop.f32.mrf.mxu0
      %v845 = vadd.f32 0.0, %v844
      %v846 = vpop.f32.mrf.mxu0
      %v847 = vpop.f32.mrf.mxu0
      %v848 = vadd.f32 0.0, %v847
      %v849 = vpop.f32.mrf.mxu0
      %850 = vmatprep.mubr.bf16.mxu0 0
      %851 = vmatmul.mubr.bf16.gmra.mxu0 %v668
      %v852 = vpop.f32.mrf.mxu0
      %v853 = vadd.f32 0.0, %v852
      %v854 = vpop.f32.mrf.mxu0
      %v855 = vpop.f32.mrf.mxu0
      %v856 = vadd.f32 0.0, %v855
      %v857 = vpop.f32.mrf.mxu0
      %858 = vmatprep.mubr.bf16.mxu0 0
      %859 = vmatmul.mubr.bf16.gmra.mxu0 %v671
      %v860 = vpop.f32.mrf.mxu0
      %v861 = vadd.f32 0.0, %v860
      %v862 = vpop.f32.mrf.mxu0
      %v863 = vpop.f32.mrf.mxu0
      %v864 = vadd.f32 0.0, %v863
      %v865 = vpop.f32.mrf.mxu0
      %866 = vmatprep.mubr.bf16.mxu0 0
      %867 = vmatmul.mubr.bf16.gmra.mxu0 %v674
      %v868 = vpop.f32.mrf.mxu0
      %v869 = vadd.f32 0.0, %v868
      %v870 = vpop.f32.mrf.mxu0
      %v871 = vpop.f32.mrf.mxu0
      %v872 = vadd.f32 0.0, %v871
      %v873 = vpop.f32.mrf.mxu0
      %874 = vmatprep.mubr.bf16.mxu0 0
      %875 = vmatmul.mubr.bf16.gmra.mxu0 %v677
      %v876 = vpop.f32.mrf.mxu0
      %v877 = vadd.f32 0.0, %v876
      %v878 = vpop.f32.mrf.mxu0
      %v879 = vpop.f32.mrf.mxu0
      %v880 = vadd.f32 0.0, %v879
      %v881 = vpop.f32.mrf.mxu0
      %882 = vmatprep.mubr.bf16.mxu0 0
      %883 = vmatmul.mubr.bf16.gmra.mxu0 %v680
      %v884 = vpop.f32.mrf.mxu0
      %v885 = vadd.f32 0.0, %v884
      %v886 = vpop.f32.mrf.mxu0
      %v887 = vpop.f32.mrf.mxu0
      %v888 = vadd.f32 0.0, %v887
      %v889 = vpop.f32.mrf.mxu0
      %890 = vmatprep.mubr.bf16.mxu0 0
      %891 = vmatmul.mubr.bf16.gmra.mxu0 %v683
      %v892 = vpop.f32.mrf.mxu0
      %v893 = vadd.f32 0.0, %v892
      %v894 = vpop.f32.mrf.mxu0
      %v895 = vpop.f32.mrf.mxu0
      %v896 = vadd.f32 0.0, %v895
      %v897 = vpop.f32.mrf.mxu0
      %898 = vmatprep.mubr.bf16.mxu0 0
      %899 = vmatmul.mubr.bf16.gmra.mxu0 %v686
      %v900 = vpop.f32.mrf.mxu0
      %v901 = vadd.f32 0.0, %v900
      %v902 = vpop.f32.mrf.mxu0
      %v903 = vpop.f32.mrf.mxu0
      %v904 = vadd.f32 0.0, %v903
      %v905 = vpop.f32.mrf.mxu0
      %906 = vmatprep.mubr.bf16.mxu0 0
      %907 = vmatmul.mubr.bf16.gmra.mxu0 %v689
      %v908 = vpop.f32.mrf.mxu0
      %v909 = vadd.f32 0.0, %v908
      %v910 = vpop.f32.mrf.mxu0
      %v911 = vpop.f32.mrf.mxu0
      %v912 = vadd.f32 0.0, %v911
      %v913 = vpop.f32.mrf.mxu0
      %914 = vmatprep.mubr.bf16.mxu0 0
      %915 = vmatmul.mubr.bf16.gmra.mxu0 %v692
      %v916 = vpop.f32.mrf.mxu0
      %v917 = vadd.f32 0.0, %v916
      %v918 = vpop.f32.mrf.mxu0
      %v919 = vpop.f32.mrf.mxu0
      %v920 = vadd.f32 0.0, %v919
      %v921 = vpop.f32.mrf.mxu0
      %922 = vmatprep.mubr.bf16.mxu0 0
      %923 = vmatmul.mubr.bf16.gmra.mxu0 %v695
      %v924 = vpop.f32.mrf.mxu0
      %v925 = vadd.f32 0.0, %v924
      %v926 = vpop.f32.mrf.mxu0
      %v927 = vpop.f32.mrf.mxu0
      %v928 = vadd.f32 0.0, %v927
      %v929 = vpop.f32.mrf.mxu0
      %930 = vmatprep.mubr.bf16.mxu0 0
      %931 = vmatmul.mubr.bf16.gmra.mxu0 %v698
      %v932 = vpop.f32.mrf.mxu0
      %v933 = vadd.f32 0.0, %v932
      %v934 = vpop.f32.mrf.mxu0
      %v935 = vpop.f32.mrf.mxu0
      %v936 = vadd.f32 0.0, %v935
      %v937 = vpop.f32.mrf.mxu0
      %938 = vmatprep.mubr.bf16.mxu0 0
      %939 = vmatmul.mubr.bf16.gmra.mxu0 %v701
      %v940 = vpop.f32.mrf.mxu0
      %v941 = vadd.f32 0.0, %v940
      %v942 = vpop.f32.mrf.mxu0
      %v943 = vpop.f32.mrf.mxu0
      %v944 = vadd.f32 0.0, %v943
      %v945 = vpop.f32.mrf.mxu0
      %946 = vmatprep.mubr.bf16.mxu0 0
      %947 = vmatmul.mubr.bf16.gmra.mxu0 %v704
      %v948 = vpop.f32.mrf.mxu0
      %v949 = vadd.f32 0.0, %v948
      %v950 = vpop.f32.mrf.mxu0
      %v951 = vpop.f32.mrf.mxu0
      %v952 = vadd.f32 0.0, %v951
      %v953 = vpop.f32.mrf.mxu0
      %954 = vmatprep.mubr.bf16.mxu0 0
      %955 = vmatmul.mubr.bf16.gmra.mxu0 %v707
      %v956 = vpop.f32.mrf.mxu0
      %v957 = vadd.f32 0.0, %v956
      %v958 = vpop.f32.mrf.mxu0
      %v959 = vpop.f32.mrf.mxu0
      %v960 = vadd.f32 0.0, %v959
      %v961 = vpop.f32.mrf.mxu0
      %962 = vmatprep.mubr.bf16.mxu0 0
      %963 = vmatmul.mubr.bf16.gmra.mxu0 %v710
      %v964 = vpop.f32.mrf.mxu0
      %v965 = vadd.f32 0.0, %v964
      %v966 = vpop.f32.mrf.mxu0
      %v967 = vpop.f32.mrf.mxu0
      %v968 = vadd.f32 0.0, %v967
      %v969 = vpop.f32.mrf.mxu0
      %970 = vmatprep.mubr.bf16.mxu0 0
      %971 = vmatmul.mubr.bf16.gmra.mxu0 %v713
      %v972 = vpop.f32.mrf.mxu0
      %v973 = vadd.f32 0.0, %v972
      %v974 = vpop.f32.mrf.mxu0
      %v975 = vpop.f32.mrf.mxu0
      %v976 = vadd.f32 0.0, %v975
      %v977 = vpop.f32.mrf.mxu0
      %978 = vmatprep.mubr.bf16.mxu0 0
      %979 = vmatmul.mubr.bf16.gmra.mxu0 %v716
      %v980 = vpop.f32.mrf.mxu0
      %v981 = vadd.f32 0.0, %v980
      %v982 = vpop.f32.mrf.mxu0
      %v983 = vpop.f32.mrf.mxu0
      %v984 = vadd.f32 0.0, %v983
      %v985 = vpop.f32.mrf.mxu0
      %986 = vmatprep.mubr.bf16.mxu0 0
      %987 = vmatmul.mubr.bf16.gmra.mxu0 %v719
      %v988 = vpop.f32.mrf.mxu0
      %v989 = vadd.f32 0.0, %v988
      %v990 = vpop.f32.mrf.mxu0
      %v991 = vpop.f32.mrf.mxu0
      %v992 = vadd.f32 0.0, %v991
      %v993 = vpop.f32.mrf.mxu0
      %994 = vmatprep.mubr.bf16.mxu0 0
      %995 = vmatmul.mubr.bf16.gmra.mxu0 %v722
      %v996 = vpop.f32.mrf.mxu0
      %v997 = vadd.f32 0.0, %v996
      %v998 = vpop.f32.mrf.mxu0
      %v999 = vpop.f32.mrf.mxu0
      %v1000 = vadd.f32 0.0, %v999
      %v1001 = vpop.f32.mrf.mxu0
      %1002 = vmatprep.mubr.bf16.mxu0 0
      %1003 = vmatmul.mubr.bf16.gmra.mxu0 %v725
      %v1004 = vpop.f32.mrf.mxu0
      %v1005 = vadd.f32 0.0, %v1004
      %v1006 = vpop.f32.mrf.mxu0
      %v1007 = vpop.f32.mrf.mxu0
      %v1008 = vadd.f32 0.0, %v1007
      %v1009 = vpop.f32.mrf.mxu0
      %1010 = vmatprep.mubr.bf16.mxu0 0
      %1011 = vmatmul.mubr.bf16.gmra.mxu0 %v728
      %v1012 = vpop.f32.mrf.mxu0
      %v1013 = vadd.f32 0.0, %v1012
      %v1014 = vpop.f32.mrf.mxu0
      %v1015 = vpop.f32.mrf.mxu0
      %v1016 = vadd.f32 0.0, %v1015
      %v1017 = vpop.f32.mrf.mxu0
      %1018 = vdwg.mxu0
      %v1019 = vadd.f32 %v329, %v765
      %v1020 = vadd.f32 %v330, %v768
      %v1021 = vadd.f32 %v331, %v773
      %v1022 = vadd.f32 %v332, %v776
      %v1023 = vadd.f32 %v333, %v781
      %v1024 = vadd.f32 %v334, %v784
      %v1025 = vadd.f32 %v335, %v789
      %v1026 = vadd.f32 %v336, %v792
      %v1027 = vadd.f32 %v337, %v797
      %v1028 = vadd.f32 %v338, %v800
      %v1029 = vadd.f32 %v339, %v805
      %v1030 = vadd.f32 %v340, %v808
      %v1031 = vadd.f32 %v341, %v813
      %v1032 = vadd.f32 %v342, %v816
      %v1033 = vadd.f32 %v343, %v821
      %v1034 = vadd.f32 %v344, %v824
      %v1035 = vadd.f32 %v345, %v829
      %v1036 = vadd.f32 %v346, %v832
      %v1037 = vadd.f32 %v347, %v837
      %v1038 = vadd.f32 %v348, %v840
      %v1039 = vadd.f32 %v349, %v845
      %v1040 = vadd.f32 %v350, %v848
      %v1041 = vadd.f32 %v351, %v853
      %v1042 = vadd.f32 %v352, %v856
      %v1043 = vadd.f32 %v353, %v861
      %v1044 = vadd.f32 %v354, %v864
      %v1045 = vadd.f32 %v355, %v869
      %v1046 = vadd.f32 %v356, %v872
      %v1047 = vadd.f32 %v357, %v877
      %v1048 = vadd.f32 %v358, %v880
      %v1049 = vadd.f32 %v359, %v885
      %v1050 = vadd.f32 %v360, %v888
      %v1051 = vadd.f32 %v361, %v893
      %v1052 = vadd.f32 %v362, %v896
      %v1053 = vadd.f32 %v363, %v901
      %v1054 = vadd.f32 %v364, %v904
      %v1055 = vadd.f32 %v365, %v909
      %v1056 = vadd.f32 %v366, %v912
      %v1057 = vadd.f32 %v367, %v917
      %v1058 = vadd.f32 %v368, %v920
      %v1059 = vadd.f32 %v369, %v925
      %v1060 = vadd.f32 %v370, %v928
      %v1061 = vadd.f32 %v371, %v933
      %v1062 = vadd.f32 %v372, %v936
      %v1063 = vadd.f32 %v373, %v941
      %v1064 = vadd.f32 %v374, %v944
      %v1065 = vadd.f32 %v375, %v949
      %v1066 = vadd.f32 %v376, %v952
      %v1067 = vadd.f32 %v377, %v957
      %v1068 = vadd.f32 %v378, %v960
      %v1069 = vadd.f32 %v379, %v965
      %v1070 = vadd.f32 %v380, %v968
      %v1071 = vadd.f32 %v381, %v973
      %v1072 = vadd.f32 %v382, %v976
      %v1073 = vadd.f32 %v383, %v981
      %v1074 = vadd.f32 %v384, %v984
      %v1075 = vadd.f32 %v385, %v989
      %v1076 = vadd.f32 %v386, %v992
      %v1077 = vadd.f32 %v387, %v997
      %v1078 = vadd.f32 %v388, %v1000
      %v1079 = vadd.f32 %v389, %v1005
      %v1080 = vadd.f32 %v390, %v1008
      %v1081 = vadd.f32 %v391, %v1013
      %v1082 = vadd.f32 %v392, %v1016
      %vm1083 = vcmask 523264
      %1084 = vst.msk [vmem:[#allocation2] sm:$0xff] %vm1083, %v1019
      %1085 = vst.msk [vmem:[#allocation2 + $0x8] sm:$0xff] %vm1083, %v1020
      %1086 = vst.msk [vmem:[#allocation2 + $0x10] sm:$0xff] %vm1083, %v1021
      %1087 = vst.msk [vmem:[#allocation2 + $0x18] sm:$0xff] %vm1083, %v1022
      %1088 = vst.msk [vmem:[#allocation2 + $0x20] sm:$0xff] %vm1083, %v1023
      %1089 = vst.msk [vmem:[#allocation2 + $0x28] sm:$0xff] %vm1083, %v1024
      %1090 = vst.msk [vmem:[#allocation2 + $0x30] sm:$0xff] %vm1083, %v1025
      %1091 = vst.msk [vmem:[#allocation2 + $0x38] sm:$0xff] %vm1083, %v1026
      %1092 = vst.msk [vmem:[#allocation2 + $0x40] sm:$0xff] %vm1083, %v1027
      %1093 = vst.msk [vmem:[#allocation2 + $0x48] sm:$0xff] %vm1083, %v1028
      %1094 = vst.msk [vmem:[#allocation2 + $0x50] sm:$0xff] %vm1083, %v1029
      %1095 = vst.msk [vmem:[#allocation2 + $0x58] sm:$0xff] %vm1083, %v1030
      %1096 = vst.msk [vmem:[#allocation2 + $0x60] sm:$0xff] %vm1083, %v1031
      %1097 = vst.msk [vmem:[#allocation2 + $0x68] sm:$0xff] %vm1083, %v1032
      %1098 = vst.msk [vmem:[#allocation2 + $0x70] sm:$0xff] %vm1083, %v1033
      %1099 = vst.msk [vmem:[#allocation2 + $0x78] sm:$0xff] %vm1083, %v1034
      %1100 = vst.msk [vmem:[#allocation2 + $0x80] sm:$0xff] %vm1083, %v1035
      %1101 = vst.msk [vmem:[#allocation2 + $0x88] sm:$0xff] %vm1083, %v1036
      %1102 = vst.msk [vmem:[#allocation2 + $0x90] sm:$0xff] %vm1083, %v1037
      %1103 = vst.msk [vmem:[#allocation2 + $0x98] sm:$0xff] %vm1083, %v1038
      %1104 = vst.msk [vmem:[#allocation2 + $0xa0] sm:$0xff] %vm1083, %v1039
      %1105 = vst.msk [vmem:[#allocation2 + $0xa8] sm:$0xff] %vm1083, %v1040
      %1106 = vst.msk [vmem:[#allocation2 + $0xb0] sm:$0xff] %vm1083, %v1041
      %1107 = vst.msk [vmem:[#allocation2 + $0xb8] sm:$0xff] %vm1083, %v1042
      %1108 = vst.msk [vmem:[#allocation2 + $0xc0] sm:$0xff] %vm1083, %v1043
      %1109 = vst.msk [vmem:[#allocation2 + $0xc8] sm:$0xff] %vm1083, %v1044
      %1110 = vst.msk [vmem:[#allocation2 + $0xd0] sm:$0xff] %vm1083, %v1045
      %1111 = vst.msk [vmem:[#allocation2 + $0xd8] sm:$0xff] %vm1083, %v1046
      %1112 = vst.msk [vmem:[#allocation2 + $0xe0] sm:$0xff] %vm1083, %v1047
      %1113 = vst.msk [vmem:[#allocation2 + $0xe8] sm:$0xff] %vm1083, %v1048
      %1114 = vst.msk [vmem:[#allocation2 + $0xf0] sm:$0xff] %vm1083, %v1049
      %1115 = vst.msk [vmem:[#allocation2 + $0xf8] sm:$0xff] %vm1083, %v1050
      %1116 = vst.msk [vmem:[#allocation2 + $0x100] sm:$0xff] %vm1083, %v1051
      %1117 = vst.msk [vmem:[#allocation2 + $0x108] sm:$0xff] %vm1083, %v1052
      %1118 = vst.msk [vmem:[#allocation2 + $0x110] sm:$0xff] %vm1083, %v1053
      %1119 = vst.msk [vmem:[#allocation2 + $0x118] sm:$0xff] %vm1083, %v1054
      %1120 = vst.msk [vmem:[#allocation2 + $0x120] sm:$0xff] %vm1083, %v1055
      %1121 = vst.msk [vmem:[#allocation2 + $0x128] sm:$0xff] %vm1083, %v1056
      %1122 = vst.msk [vmem:[#allocation2 + $0x130] sm:$0xff] %vm1083, %v1057
      %1123 = vst.msk [vmem:[#allocation2 + $0x138] sm:$0xff] %vm1083, %v1058
      %1124 = vst.msk [vmem:[#allocation2 + $0x140] sm:$0xff] %vm1083, %v1059
      %1125 = vst.msk [vmem:[#allocation2 + $0x148] sm:$0xff] %vm1083, %v1060
      %1126 = vst.msk [vmem:[#allocation2 + $0x150] sm:$0xff] %vm1083, %v1061
      %1127 = vst.msk [vmem:[#allocation2 + $0x158] sm:$0xff] %vm1083, %v1062
      %1128 = vst.msk [vmem:[#allocation2 + $0x160] sm:$0xff] %vm1083, %v1063
      %1129 = vst.msk [vmem:[#allocation2 + $0x168] sm:$0xff] %vm1083, %v1064
      %1130 = vst.msk [vmem:[#allocation2 + $0x170] sm:$0xff] %vm1083, %v1065
      %1131 = vst.msk [vmem:[#allocation2 + $0x178] sm:$0xff] %vm1083, %v1066
      %1132 = vst.msk [vmem:[#allocation2 + $0x180] sm:$0xff] %vm1083, %v1067
      %1133 = vst.msk [vmem:[#allocation2 + $0x188] sm:$0xff] %vm1083, %v1068
      %1134 = vst.msk [vmem:[#allocation2 + $0x190] sm:$0xff] %vm1083, %v1069
      %1135 = vst.msk [vmem:[#allocation2 + $0x198] sm:$0xff] %vm1083, %v1070
      %1136 = vst.msk [vmem:[#allocation2 + $0x1a0] sm:$0xff] %vm1083, %v1071
      %1137 = vst.msk [vmem:[#allocation2 + $0x1a8] sm:$0xff] %vm1083, %v1072
      %1138 = vst.msk [vmem:[#allocation2 + $0x1b0] sm:$0xff] %vm1083, %v1073
      %1139 = vst.msk [vmem:[#allocation2 + $0x1b8] sm:$0xff] %vm1083, %v1074
      %1140 = vst.msk [vmem:[#allocation2 + $0x1c0] sm:$0xff] %vm1083, %v1075
      %1141 = vst.msk [vmem:[#allocation2 + $0x1c8] sm:$0xff] %vm1083, %v1076
      %1142 = vst.msk [vmem:[#allocation2 + $0x1d0] sm:$0xff] %vm1083, %v1077
      %1143 = vst.msk [vmem:[#allocation2 + $0x1d8] sm:$0xff] %vm1083, %v1078
      %1144 = vst.msk [vmem:[#allocation2 + $0x1e0] sm:$0xff] %vm1083, %v1079
      %1145 = vst.msk [vmem:[#allocation2 + $0x1e8] sm:$0xff] %vm1083, %v1080
      %1146 = vst.msk [vmem:[#allocation2 + $0x1f0] sm:$0xff] %vm1083, %v1081
      %1147 = vst.msk [vmem:[#allocation2 + $0x1f8] sm:$0xff] %vm1083, %v1082
      // Predicated region
      $region37: #{tpu_custom_call.1} parent=31 // pred_check
        %p1148 = pneg %p260
      $region38: #{tpu_custom_call.1} parent=31 // pred_check_branch
        %1150 = sbr.rel (%p1148) target = $region40
      $region39: #{tpu_custom_call.1} parent=31 // pred_region
        %v1151 = vld [vmem:[#allocation2] sm:$0xff]
        %v1152 = vld [vmem:[#allocation2 + $0x8] sm:$0xff]
        %v1153 = vld [vmem:[#allocation2 + $0x10] sm:$0xff]
        %v1154 = vld [vmem:[#allocation2 + $0x18] sm:$0xff]
        %v1155 = vld [vmem:[#allocation2 + $0x20] sm:$0xff]
        %v1156 = vld [vmem:[#allocation2 + $0x28] sm:$0xff]
        %v1157 = vld [vmem:[#allocation2 + $0x30] sm:$0xff]
        %v1158 = vld [vmem:[#allocation2 + $0x38] sm:$0xff]
        %v1159 = vld [vmem:[#allocation2 + $0x40] sm:$0xff]
        %v1160 = vld [vmem:[#allocation2 + $0x48] sm:$0xff]
        %v1161 = vld [vmem:[#allocation2 + $0x50] sm:$0xff]
        %v1162 = vld [vmem:[#allocation2 + $0x58] sm:$0xff]
        %v1163 = vld [vmem:[#allocation2 + $0x60] sm:$0xff]
        %v1164 = vld [vmem:[#allocation2 + $0x68] sm:$0xff]
        %v1165 = vld [vmem:[#allocation2 + $0x70] sm:$0xff]
        %v1166 = vld [vmem:[#allocation2 + $0x78] sm:$0xff]
        %v1167 = vld [vmem:[#allocation2 + $0x80] sm:$0xff]
        %v1168 = vld [vmem:[#allocation2 + $0x88] sm:$0xff]
        %v1169 = vld [vmem:[#allocation2 + $0x90] sm:$0xff]
        %v1170 = vld [vmem:[#allocation2 + $0x98] sm:$0xff]
        %v1171 = vld [vmem:[#allocation2 + $0xa0] sm:$0xff]
        %v1172 = vld [vmem:[#allocation2 + $0xa8] sm:$0xff]
        %v1173 = vld [vmem:[#allocation2 + $0xb0] sm:$0xff]
        %v1174 = vld [vmem:[#allocation2 + $0xb8] sm:$0xff]
        %v1175 = vld [vmem:[#allocation2 + $0xc0] sm:$0xff]
        %v1176 = vld [vmem:[#allocation2 + $0xc8] sm:$0xff]
        %v1177 = vld [vmem:[#allocation2 + $0xd0] sm:$0xff]
        %v1178 = vld [vmem:[#allocation2 + $0xd8] sm:$0xff]
        %v1179 = vld [vmem:[#allocation2 + $0xe0] sm:$0xff]
        %v1180 = vld [vmem:[#allocation2 + $0xe8] sm:$0xff]
        %v1181 = vld [vmem:[#allocation2 + $0xf0] sm:$0xff]
        %v1182 = vld [vmem:[#allocation2 + $0xf8] sm:$0xff]
        %v1183 = vld [vmem:[#allocation2 + $0x100] sm:$0xff]
        %v1184 = vld [vmem:[#allocation2 + $0x108] sm:$0xff]
        %v1185 = vld [vmem:[#allocation2 + $0x110] sm:$0xff]
        %v1186 = vld [vmem:[#allocation2 + $0x118] sm:$0xff]
        %v1187 = vld [vmem:[#allocation2 + $0x120] sm:$0xff]
        %v1188 = vld [vmem:[#allocation2 + $0x128] sm:$0xff]
        %v1189 = vld [vmem:[#allocation2 + $0x130] sm:$0xff]
        %v1190 = vld [vmem:[#allocation2 + $0x138] sm:$0xff]
        %v1191 = vld [vmem:[#allocation2 + $0x140] sm:$0xff]
        %v1192 = vld [vmem:[#allocation2 + $0x148] sm:$0xff]
        %v1193 = vld [vmem:[#allocation2 + $0x150] sm:$0xff]
        %v1194 = vld [vmem:[#allocation2 + $0x158] sm:$0xff]
        %v1195 = vld [vmem:[#allocation2 + $0x160] sm:$0xff]
        %v1196 = vld [vmem:[#allocation2 + $0x168] sm:$0xff]
        %v1197 = vld [vmem:[#allocation2 + $0x170] sm:$0xff]
        %v1198 = vld [vmem:[#allocation2 + $0x178] sm:$0xff]
        %v1199 = vld [vmem:[#allocation2 + $0x180] sm:$0xff]
        %v1200 = vld [vmem:[#allocation2 + $0x188] sm:$0xff]
        %v1201 = vld [vmem:[#allocation2 + $0x190] sm:$0xff]
        %v1202 = vld [vmem:[#allocation2 + $0x198] sm:$0xff]
        %v1203 = vld [vmem:[#allocation2 + $0x1a0] sm:$0xff]
        %v1204 = vld [vmem:[#allocation2 + $0x1a8] sm:$0xff]
        %v1205 = vld [vmem:[#allocation2 + $0x1b0] sm:$0xff]
        %v1206 = vld [vmem:[#allocation2 + $0x1b8] sm:$0xff]
        %v1207 = vld [vmem:[#allocation2 + $0x1c0] sm:$0xff]
        %v1208 = vld [vmem:[#allocation2 + $0x1c8] sm:$0xff]
        %v1209 = vld [vmem:[#allocation2 + $0x1d0] sm:$0xff]
        %v1210 = vld [vmem:[#allocation2 + $0x1d8] sm:$0xff]
        %v1211 = vld [vmem:[#allocation2 + $0x1e0] sm:$0xff]
        %v1212 = vld [vmem:[#allocation2 + $0x1e8] sm:$0xff]
        %v1213 = vld [vmem:[#allocation2 + $0x1f0] sm:$0xff]
        %v1214 = vld [vmem:[#allocation2 + $0x1f8] sm:$0xff]
        %v1215 = vld [vmem:[%s249] sm:$0x1]
        %v1217 = vlaneseq
        %v1218 = vshrl.u32 %v1217, 7
        %v1219 = vsub.s32 0, %v1218
        %v1220 = vrot.slane %v1215, %v1219
        %v1222 = vadd.f32 %v1151, %v1220
        %v1223 = vadd.f32 %v1152, %v1220
        %v1224 = vadd.f32 %v1153, %v1220
        %v1225 = vadd.f32 %v1154, %v1220
        %v1226 = vadd.f32 %v1155, %v1220
        %v1227 = vadd.f32 %v1156, %v1220
        %v1228 = vadd.f32 %v1157, %v1220
        %v1229 = vadd.f32 %v1158, %v1220
        %v1230 = vadd.f32 %v1159, %v1220
        %v1231 = vadd.f32 %v1160, %v1220
        %v1232 = vadd.f32 %v1161, %v1220
        %v1233 = vadd.f32 %v1162, %v1220
        %v1234 = vadd.f32 %v1163, %v1220
        %v1235 = vadd.f32 %v1164, %v1220
        %v1236 = vadd.f32 %v1165, %v1220
        %v1237 = vadd.f32 %v1166, %v1220
        %v1238 = vadd.f32 %v1167, %v1220
        %v1239 = vadd.f32 %v1168, %v1220
        %v1240 = vadd.f32 %v1169, %v1220
        %v1241 = vadd.f32 %v1170, %v1220
        %v1242 = vadd.f32 %v1171, %v1220
        %v1243 = vadd.f32 %v1172, %v1220
        %v1244 = vadd.f32 %v1173, %v1220
        %v1245 = vadd.f32 %v1174, %v1220
        %v1246 = vadd.f32 %v1175, %v1220
        %v1247 = vadd.f32 %v1176, %v1220
        %v1248 = vadd.f32 %v1177, %v1220
        %v1249 = vadd.f32 %v1178, %v1220
        %v1250 = vadd.f32 %v1179, %v1220
        %v1251 = vadd.f32 %v1180, %v1220
        %v1252 = vadd.f32 %v1181, %v1220
        %v1253 = vadd.f32 %v1182, %v1220
        %v1254 = vadd.f32 %v1183, %v1220
        %v1255 = vadd.f32 %v1184, %v1220
        %v1256 = vadd.f32 %v1185, %v1220
        %v1257 = vadd.f32 %v1186, %v1220
        %v1258 = vadd.f32 %v1187, %v1220
        %v1259 = vadd.f32 %v1188, %v1220
        %v1260 = vadd.f32 %v1189, %v1220
        %v1261 = vadd.f32 %v1190, %v1220
        %v1262 = vadd.f32 %v1191, %v1220
        %v1263 = vadd.f32 %v1192, %v1220
        %v1264 = vadd.f32 %v1193, %v1220
        %v1265 = vadd.f32 %v1194, %v1220
        %v1266 = vadd.f32 %v1195, %v1220
        %v1267 = vadd.f32 %v1196, %v1220
        %v1268 = vadd.f32 %v1197, %v1220
        %v1269 = vadd.f32 %v1198, %v1220
        %v1270 = vadd.f32 %v1199, %v1220
        %v1271 = vadd.f32 %v1200, %v1220
        %v1272 = vadd.f32 %v1201, %v1220
        %v1273 = vadd.f32 %v1202, %v1220
        %v1274 = vadd.f32 %v1203, %v1220
        %v1275 = vadd.f32 %v1204, %v1220
        %v1276 = vadd.f32 %v1205, %v1220
        %v1277 = vadd.f32 %v1206, %v1220
        %v1278 = vadd.f32 %v1207, %v1220
        %v1279 = vadd.f32 %v1208, %v1220
        %v1280 = vadd.f32 %v1209, %v1220
        %v1281 = vadd.f32 %v1210, %v1220
        %v1282 = vadd.f32 %v1211, %v1220
        %v1283 = vadd.f32 %v1212, %v1220
        %v1284 = vadd.f32 %v1213, %v1220
        %v1285 = vadd.f32 %v1214, %v1220
        %v1286 = vpack.c.bf16 %v1223, %v1222
        %v1287 = vpack.c.bf16 %v1225, %v1224
        %v1288 = vpack.c.bf16 %v1227, %v1226
        %v1289 = vpack.c.bf16 %v1229, %v1228
        %v1290 = vpack.c.bf16 %v1231, %v1230
        %v1291 = vpack.c.bf16 %v1233, %v1232
        %v1292 = vpack.c.bf16 %v1235, %v1234
        %v1293 = vpack.c.bf16 %v1237, %v1236
        %v1294 = vpack.c.bf16 %v1239, %v1238
        %v1295 = vpack.c.bf16 %v1241, %v1240
        %v1296 = vpack.c.bf16 %v1243, %v1242
        %v1297 = vpack.c.bf16 %v1245, %v1244
        %v1298 = vpack.c.bf16 %v1247, %v1246
        %v1299 = vpack.c.bf16 %v1249, %v1248
        %v1300 = vpack.c.bf16 %v1251, %v1250
        %v1301 = vpack.c.bf16 %v1253, %v1252
        %v1302 = vpack.c.bf16 %v1255, %v1254
        %v1303 = vpack.c.bf16 %v1257, %v1256
        %v1304 = vpack.c.bf16 %v1259, %v1258
        %v1305 = vpack.c.bf16 %v1261, %v1260
        %v1306 = vpack.c.bf16 %v1263, %v1262
        %v1307 = vpack.c.bf16 %v1265, %v1264
        %v1308 = vpack.c.bf16 %v1267, %v1266
        %v1309 = vpack.c.bf16 %v1269, %v1268
        %v1310 = vpack.c.bf16 %v1271, %v1270
        %v1311 = vpack.c.bf16 %v1273, %v1272
        %v1312 = vpack.c.bf16 %v1275, %v1274
        %v1313 = vpack.c.bf16 %v1277, %v1276
        %v1314 = vpack.c.bf16 %v1279, %v1278
        %v1315 = vpack.c.bf16 %v1281, %v1280
        %v1316 = vpack.c.bf16 %v1283, %v1282
        %v1317 = vpack.c.bf16 %v1285, %v1284
        %v1350 = vunpack.c.l.b16 %v1286
        %v1351 = vunpack.c.h.b16 %v1286
        %v1352 = vunpack.c.l.b16 %v1287
        %v1353 = vunpack.c.h.b16 %v1287
        %v1354 = vunpack.c.l.b16 %v1288
        %v1355 = vunpack.c.h.b16 %v1288
        %v1356 = vunpack.c.l.b16 %v1289
        %v1357 = vunpack.c.h.b16 %v1289
        %v1358 = vunpack.c.l.b16 %v1290
        %v1359 = vunpack.c.h.b16 %v1290
        %v1360 = vunpack.c.l.b16 %v1291
        %v1361 = vunpack.c.h.b16 %v1291
        %v1362 = vunpack.c.l.b16 %v1292
        %v1363 = vunpack.c.h.b16 %v1292
        %v1364 = vunpack.c.l.b16 %v1293
        %v1365 = vunpack.c.h.b16 %v1293
        %v1366 = vunpack.c.l.b16 %v1294
        %v1367 = vunpack.c.h.b16 %v1294
        %v1368 = vunpack.c.l.b16 %v1295
        %v1369 = vunpack.c.h.b16 %v1295
        %v1370 = vunpack.c.l.b16 %v1296
        %v1371 = vunpack.c.h.b16 %v1296
        %v1372 = vunpack.c.l.b16 %v1297
        %v1373 = vunpack.c.h.b16 %v1297
        %v1374 = vunpack.c.l.b16 %v1298
        %v1375 = vunpack.c.h.b16 %v1298
        %v1376 = vunpack.c.l.b16 %v1299
        %v1377 = vunpack.c.h.b16 %v1299
        %v1378 = vunpack.c.l.b16 %v1300
        %v1379 = vunpack.c.h.b16 %v1300
        %v1380 = vunpack.c.l.b16 %v1301
        %v1381 = vunpack.c.h.b16 %v1301
        %v1382 = vunpack.c.l.b16 %v1302
        %v1383 = vunpack.c.h.b16 %v1302
        %v1384 = vunpack.c.l.b16 %v1303
        %v1385 = vunpack.c.h.b16 %v1303
        %v1386 = vunpack.c.l.b16 %v1304
        %v1387 = vunpack.c.h.b16 %v1304
        %v1388 = vunpack.c.l.b16 %v1305
        %v1389 = vunpack.c.h.b16 %v1305
        %v1390 = vunpack.c.l.b16 %v1306
        %v1391 = vunpack.c.h.b16 %v1306
        %v1392 = vunpack.c.l.b16 %v1307
        %v1393 = vunpack.c.h.b16 %v1307
        %v1394 = vunpack.c.l.b16 %v1308
        %v1395 = vunpack.c.h.b16 %v1308
        %v1396 = vunpack.c.l.b16 %v1309
        %v1397 = vunpack.c.h.b16 %v1309
        %v1398 = vunpack.c.l.b16 %v1310
        %v1399 = vunpack.c.h.b16 %v1310
        %v1400 = vunpack.c.l.b16 %v1311
        %v1401 = vunpack.c.h.b16 %v1311
        %v1402 = vunpack.c.l.b16 %v1312
        %v1403 = vunpack.c.h.b16 %v1312
        %v1404 = vunpack.c.l.b16 %v1313
        %v1405 = vunpack.c.h.b16 %v1313
        %v1406 = vunpack.c.l.b16 %v1314
        %v1407 = vunpack.c.h.b16 %v1314
        %v1408 = vunpack.c.l.b16 %v1315
        %v1409 = vunpack.c.h.b16 %v1315
        %v1410 = vunpack.c.l.b16 %v1316
        %v1411 = vunpack.c.h.b16 %v1316
        %v1412 = vunpack.c.l.b16 %v1317
        %v1413 = vunpack.c.h.b16 %v1317
        %v1414 = vpack.c.b16 %v1350, %v1350
        %v1415 = vpack.c.b16 %v1351, %v1351
        %v1416 = vpack.c.b16 %v1352, %v1352
        %v1417 = vpack.c.b16 %v1353, %v1353
        %v1418 = vpack.c.b16 %v1354, %v1354
        %v1419 = vpack.c.b16 %v1355, %v1355
        %v1420 = vpack.c.b16 %v1356, %v1356
        %v1421 = vpack.c.b16 %v1357, %v1357
        %v1422 = vpack.c.b16 %v1358, %v1358
        %v1423 = vpack.c.b16 %v1359, %v1359
        %v1424 = vpack.c.b16 %v1360, %v1360
        %v1425 = vpack.c.b16 %v1361, %v1361
        %v1426 = vpack.c.b16 %v1362, %v1362
        %v1427 = vpack.c.b16 %v1363, %v1363
        %v1428 = vpack.c.b16 %v1364, %v1364
        %v1429 = vpack.c.b16 %v1365, %v1365
        %v1430 = vpack.c.b16 %v1366, %v1366
        %v1431 = vpack.c.b16 %v1367, %v1367
        %v1432 = vpack.c.b16 %v1368, %v1368
        %v1433 = vpack.c.b16 %v1369, %v1369
        %v1434 = vpack.c.b16 %v1370, %v1370
        %v1435 = vpack.c.b16 %v1371, %v1371
        %v1436 = vpack.c.b16 %v1372, %v1372
        %v1437 = vpack.c.b16 %v1373, %v1373
        %v1438 = vpack.c.b16 %v1374, %v1374
        %v1439 = vpack.c.b16 %v1375, %v1375
        %v1440 = vpack.c.b16 %v1376, %v1376
        %v1441 = vpack.c.b16 %v1377, %v1377
        %v1442 = vpack.c.b16 %v1378, %v1378
        %v1443 = vpack.c.b16 %v1379, %v1379
        %v1444 = vpack.c.b16 %v1380, %v1380
        %v1445 = vpack.c.b16 %v1381, %v1381
        %v1446 = vpack.c.b16 %v1382, %v1382
        %v1447 = vpack.c.b16 %v1383, %v1383
        %v1448 = vpack.c.b16 %v1384, %v1384
        %v1449 = vpack.c.b16 %v1385, %v1385
        %v1450 = vpack.c.b16 %v1386, %v1386
        %v1451 = vpack.c.b16 %v1387, %v1387
        %v1452 = vpack.c.b16 %v1388, %v1388
        %v1453 = vpack.c.b16 %v1389, %v1389
        %v1454 = vpack.c.b16 %v1390, %v1390
        %v1455 = vpack.c.b16 %v1391, %v1391
        %v1456 = vpack.c.b16 %v1392, %v1392
        %v1457 = vpack.c.b16 %v1393, %v1393
        %v1458 = vpack.c.b16 %v1394, %v1394
        %v1459 = vpack.c.b16 %v1395, %v1395
        %v1460 = vpack.c.b16 %v1396, %v1396
        %v1461 = vpack.c.b16 %v1397, %v1397
        %v1462 = vpack.c.b16 %v1398, %v1398
        %v1463 = vpack.c.b16 %v1399, %v1399
        %v1464 = vpack.c.b16 %v1400, %v1400
        %v1465 = vpack.c.b16 %v1401, %v1401
        %v1466 = vpack.c.b16 %v1402, %v1402
        %v1467 = vpack.c.b16 %v1403, %v1403
        %v1468 = vpack.c.b16 %v1404, %v1404
        %v1469 = vpack.c.b16 %v1405, %v1405
        %v1470 = vpack.c.b16 %v1406, %v1406
        %v1471 = vpack.c.b16 %v1407, %v1407
        %v1472 = vpack.c.b16 %v1408, %v1408
        %v1473 = vpack.c.b16 %v1409, %v1409
        %v1474 = vpack.c.b16 %v1410, %v1410
        %v1475 = vpack.c.b16 %v1411, %v1411
        %v1476 = vpack.c.b16 %v1412, %v1412
        %v1477 = vpack.c.b16 %v1413, %v1413
        %vm1542 = vcmask 519168
        %1543 = vst.msk [vmem:[%s257] sm:$0xf] %vm1542, %v1414
        %1544 = vst.msk [vmem:[%s257 + $0x4] sm:$0xf] %vm1542, %v1415
        %1545 = vst.msk [vmem:[%s257 + $0x8] sm:$0xf] %vm1542, %v1416
        %1546 = vst.msk [vmem:[%s257 + $0xc] sm:$0xf] %vm1542, %v1417
        %1547 = vst.msk [vmem:[%s257 + $0x10] sm:$0xf] %vm1542, %v1418
        %1548 = vst.msk [vmem:[%s257 + $0x14] sm:$0xf] %vm1542, %v1419
        %1549 = vst.msk [vmem:[%s257 + $0x18] sm:$0xf] %vm1542, %v1420
        %1550 = vst.msk [vmem:[%s257 + $0x1c] sm:$0xf] %vm1542, %v1421
        %1551 = vst.msk [vmem:[%s257 + $0x20] sm:$0xf] %vm1542, %v1422
        %1552 = vst.msk [vmem:[%s257 + $0x24] sm:$0xf] %vm1542, %v1423
        %1553 = vst.msk [vmem:[%s257 + $0x28] sm:$0xf] %vm1542, %v1424
        %1554 = vst.msk [vmem:[%s257 + $0x2c] sm:$0xf] %vm1542, %v1425
        %1555 = vst.msk [vmem:[%s257 + $0x30] sm:$0xf] %vm1542, %v1426
        %1556 = vst.msk [vmem:[%s257 + $0x34] sm:$0xf] %vm1542, %v1427
        %1557 = vst.msk [vmem:[%s257 + $0x38] sm:$0xf] %vm1542, %v1428
        %1558 = vst.msk [vmem:[%s257 + $0x3c] sm:$0xf] %vm1542, %v1429
        %1559 = vst.msk [vmem:[%s257 + $0x40] sm:$0xf] %vm1542, %v1430
        %1560 = vst.msk [vmem:[%s257 + $0x44] sm:$0xf] %vm1542, %v1431
        %1561 = vst.msk [vmem:[%s257 + $0x48] sm:$0xf] %vm1542, %v1432
        %1562 = vst.msk [vmem:[%s257 + $0x4c] sm:$0xf] %vm1542, %v1433
        %1563 = vst.msk [vmem:[%s257 + $0x50] sm:$0xf] %vm1542, %v1434
        %1564 = vst.msk [vmem:[%s257 + $0x54] sm:$0xf] %vm1542, %v1435
        %1565 = vst.msk [vmem:[%s257 + $0x58] sm:$0xf] %vm1542, %v1436
        %1566 = vst.msk [vmem:[%s257 + $0x5c] sm:$0xf] %vm1542, %v1437
        %1567 = vst.msk [vmem:[%s257 + $0x60] sm:$0xf] %vm1542, %v1438
        %1568 = vst.msk [vmem:[%s257 + $0x64] sm:$0xf] %vm1542, %v1439
        %1569 = vst.msk [vmem:[%s257 + $0x68] sm:$0xf] %vm1542, %v1440
        %1570 = vst.msk [vmem:[%s257 + $0x6c] sm:$0xf] %vm1542, %v1441
        %1571 = vst.msk [vmem:[%s257 + $0x70] sm:$0xf] %vm1542, %v1442
        %1572 = vst.msk [vmem:[%s257 + $0x74] sm:$0xf] %vm1542, %v1443
        %1573 = vst.msk [vmem:[%s257 + $0x78] sm:$0xf] %vm1542, %v1444
        %1574 = vst.msk [vmem:[%s257 + $0x7c] sm:$0xf] %vm1542, %v1445
        %1575 = vst.msk [vmem:[%s257 + $0x80] sm:$0xf] %vm1542, %v1446
        %1576 = vst.msk [vmem:[%s257 + $0x84] sm:$0xf] %vm1542, %v1447
        %1577 = vst.msk [vmem:[%s257 + $0x88] sm:$0xf] %vm1542, %v1448
        %1578 = vst.msk [vmem:[%s257 + $0x8c] sm:$0xf] %vm1542, %v1449
        %1579 = vst.msk [vmem:[%s257 + $0x90] sm:$0xf] %vm1542, %v1450
        %1580 = vst.msk [vmem:[%s257 + $0x94] sm:$0xf] %vm1542, %v1451
        %1581 = vst.msk [vmem:[%s257 + $0x98] sm:$0xf] %vm1542, %v1452
        %1582 = vst.msk [vmem:[%s257 + $0x9c] sm:$0xf] %vm1542, %v1453
        %1583 = vst.msk [vmem:[%s257 + $0xa0] sm:$0xf] %vm1542, %v1454
        %1584 = vst.msk [vmem:[%s257 + $0xa4] sm:$0xf] %vm1542, %v1455
        %1585 = vst.msk [vmem:[%s257 + $0xa8] sm:$0xf] %vm1542, %v1456
        %1586 = vst.msk [vmem:[%s257 + $0xac] sm:$0xf] %vm1542, %v1457
        %1587 = vst.msk [vmem:[%s257 + $0xb0] sm:$0xf] %vm1542, %v1458
        %1588 = vst.msk [vmem:[%s257 + $0xb4] sm:$0xf] %vm1542, %v1459
        %1589 = vst.msk [vmem:[%s257 + $0xb8] sm:$0xf] %vm1542, %v1460
        %1590 = vst.msk [vmem:[%s257 + $0xbc] sm:$0xf] %vm1542, %v1461
        %1591 = vst.msk [vmem:[%s257 + $0xc0] sm:$0xf] %vm1542, %v1462
        %1592 = vst.msk [vmem:[%s257 + $0xc4] sm:$0xf] %vm1542, %v1463
        %1593 = vst.msk [vmem:[%s257 + $0xc8] sm:$0xf] %vm1542, %v1464
        %1594 = vst.msk [vmem:[%s257 + $0xcc] sm:$0xf] %vm1542, %v1465
        %1595 = vst.msk [vmem:[%s257 + $0xd0] sm:$0xf] %vm1542, %v1466
        %1596 = vst.msk [vmem:[%s257 + $0xd4] sm:$0xf] %vm1542, %v1467
        %1597 = vst.msk [vmem:[%s257 + $0xd8] sm:$0xf] %vm1542, %v1468
        %1598 = vst.msk [vmem:[%s257 + $0xdc] sm:$0xf] %vm1542, %v1469
        %1599 = vst.msk [vmem:[%s257 + $0xe0] sm:$0xf] %vm1542, %v1470
        %1600 = vst.msk [vmem:[%s257 + $0xe4] sm:$0xf] %vm1542, %v1471
        %1601 = vst.msk [vmem:[%s257 + $0xe8] sm:$0xf] %vm1542, %v1472
        %1602 = vst.msk [vmem:[%s257 + $0xec] sm:$0xf] %vm1542, %v1473
        %1603 = vst.msk [vmem:[%s257 + $0xf0] sm:$0xf] %vm1542, %v1474
        %1604 = vst.msk [vmem:[%s257 + $0xf4] sm:$0xf] %vm1542, %v1475
        %1605 = vst.msk [vmem:[%s257 + $0xf8] sm:$0xf] %vm1542, %v1476
        %1606 = vst.msk [vmem:[%s257 + $0xfc] sm:$0xf] %vm1542, %v1477
      $region40: #{tpu_custom_call.1} parent=31 // pred_fallthru
        _
      %s1607 = smul.u32 64, %s19
      %p1608 = scmp.lt.s32.totalorder %s1607, 255
      %s1609 = scalar_select %p1608, %s1607, 255
      %p1610 = scmp.lt.s32.totalorder %s20, 0
      %s1611 = scalar_select %p1610, %s20, 0
      %s1612 = sadd.s32 %s1611, %s1609
      %s1613 = smul.addr %s1612, 4
      %s1614 = scalar_lea.vmem %s3, %s1613
      // Predicated region
      $region41: #{tpu_custom_call.1} parent=31 // pred_check
        %p1615 = pneg %p135
      $region42: #{tpu_custom_call.1} parent=31 // pred_check_branch
        %1617 = sbr.rel (%p1615) target = $region44
      $region43: #{tpu_custom_call.1} parent=31 // pred_region
        %s1618 = smul.u32 64, %s19
      $region44: #{tpu_custom_call.1} parent=31 // pred_fallthru
        _
    $region32: #{tpu_custom_call.1} parent=5 // pred_fallthru
      _
    %p1619 = scmp.le.s32.totalorder 2, %s9
    // Predicated region
    $region45: #{tpu_custom_call.1} parent=5 // pred_check
      %p1620 = pneg %p1619
    $region46: #{tpu_custom_call.1} parent=5 // pred_check_branch
      %1622 = sbr.rel (%p1620) target = $region48
    $region47: #{tpu_custom_call.1} parent=5 // pred_region
      %s1623 = ssub.s32 %s9, 2
      // Predicated region
      $region49: #{tpu_custom_call.1} parent=47 // pred_check
        %p1624 = pneg %p141
      $region50: #{tpu_custom_call.1} parent=47 // pred_check_branch
        %1626 = sbr.rel (%p1624) target = $region52
      $region51: #{tpu_custom_call.1} parent=47 // pred_region
        %s1627 = smul.u32 64, %s22
        %p1628 = scmp.lt.s32.totalorder %s1627, 255
        %s1629 = scalar_select %p1628, %s1627, 255
        %p1630 = scmp.lt.s32.totalorder %s23, 0
        %s1631 = scalar_select %p1630, %s23, 0
        %s1632 = sadd.s32 %s1631, %s1629
        %s1633 = smul.addr %s1632, 4
        %s1634 = scalar_lea.vmem %s3, %s1633
      $region52: #{tpu_custom_call.1} parent=47 // pred_fallthru
        _
    $region48: #{tpu_custom_call.1} parent=5 // pred_fallthru
      _
  $region6: #{tpu_custom_call.1} parent=0 // loop_footer
    %s13 = sadd.s32 1, %s9
  $region7: #{tpu_custom_call.1} parent=0 // loop_footer_branch
    %8 = sbr.rel target = $region3
  $region8: #{tpu_custom_call.1} parent=0 // loop_exit
    _

</llo_original>
